<compile_context>
chip_gen: v5e
topology: v5e:2x2
jax: 0.10.0
libtpu: 0.0.40
codegen_flags: <defaults>
</compile_context>

<pallas_src>
import functools

import jax
import jax.numpy as jnp
import numpy as np
from jax.experimental import pallas as pl
from jax.experimental.pallas import tpu as pltpu

GN_EPS = 1e-5
INV_SQRT2 = 0.7071067811865476


def _round_up(v, m):
    return (v + m - 1) // m * m


# ---------------------------------------------------------------------------
# Fused kernel: upsample(x) ++ skip -> DoubleConv -> DoubleConv -> + emb
# All activations are [C_pad, HW] (channels on sublanes, HW lane-dense).
# ---------------------------------------------------------------------------
def _fused_up_kernel(
    skip_ref, x_ref, emb_ref, mt_ref,
    w1a_ref, g1a_ref, b1a_ref,
    w1b_ref, g1b_ref, b1b_ref,
    w2a_ref, g2a_ref, b2a_ref,
    w2b_ref, g2b_ref, b2b_ref,
    o_ref,
    *, W, HW, n1a, n1b, n2a, n2b,
):
    PAD = _round_up(W + 1, 128)   # lane-aligned zero halo, >= max |dy*W + dx|

    # Column-validity masks (lane axis) for the +/-1 x-shifts; the zero halo
    # already handles the +/-1 y-shifts, so only the x-wrap needs masking.
    col = jax.lax.broadcasted_iota(jnp.int32, (1, HW), 1) % W
    mask_m1 = col >= 1            # reading (x - 1) is valid
    mask_p1 = col <= W - 2        # reading (x + 1) is valid

    def conv3x3(h, w_ref):
        # h: [Cp, HW]; w_ref: [CoutP, 9*Cp]  ->  [CoutP, HW]  (one MXU matmul)
        cp = h.shape[0]
        halo = jnp.zeros((cp, PAD), jnp.float32)
        hp = jnp.concatenate([halo, h, halo], axis=1)     # 128-aligned lane concat
        taps = []
        for dy in (-1, 0, 1):
            for dx in (-1, 0, 1):
                s = dy * W + dx
                tap = h if s == 0 else hp[:, PAD + s:PAD + s + HW]
                if dx == -1:
                    tap = jnp.where(mask_m1, tap, 0.0)
                elif dx == 1:
                    tap = jnp.where(mask_p1, tap, 0.0)
                taps.append(tap)
        hs = jnp.concatenate(taps, axis=0)                # [9*Cp, HW], sublane-aligned
        return jnp.dot(w_ref[...], hs, preferred_element_type=jnp.float32)

    def group_norm(y, n_real, g_ref, b_ref):
        # GroupNorm(num_groups=1): single-pass stats over the n_real REAL elems.
        # Pad channels are exactly zero and have zero gamma/beta, so they stay
        # zero and contribute nothing to sum / sum-of-squares.
        s1 = jnp.sum(y, keepdims=True)                    # (1, 1)
        s2 = jnp.sum(y * y, keepdims=True)                # (1, 1)
        mean = s1 / n_real
        var = jnp.maximum(s2 / n_real - mean * mean, 0.0)
        return (y - mean) * jax.lax.rsqrt(var + GN_EPS) * g_ref[...] + b_ref[...]

    def gelu(y):
        # Exact-erf GELU; erf via Abramowitz&Stegun 7.1.26 (|err| <= 1.5e-7).
        z = y * INV_SQRT2
        az = jnp.abs(z)
        t = 1.0 / (1.0 + 0.3275911 * az)
        poly = ((((1.061405429 * t - 1.453152027) * t + 1.421413741) * t
                 - 0.284496736) * t + 0.254829592) * t
        e = 1.0 - poly * jnp.exp(-az * az)
        erf = jnp.where(z < 0.0, -e, e)
        return 0.5 * y * (1.0 + erf)

    # Bilinear 2x upsample (align_corners=True) as one matmul on the MXU, then
    # fold the skip/upsample concat into conv1's K dim (never built in HBM).
    xu = jnp.dot(x_ref[0], mt_ref[...], preferred_element_type=jnp.float32)
    h0 = jnp.concatenate([skip_ref[0], xu], axis=0)       # [CsP + CxP, HW]

    # DoubleConv(in, in): conv-GN-GELU-conv-GN
    y = gelu(group_norm(conv3x3(h0, w1a_ref), n1a, g1a_ref, b1a_ref))
    y = group_norm(conv3x3(y, w1b_ref), n1b, g1b_ref, b1b_ref)
    # DoubleConv(in, out, mid=in//2): conv-GN-GELU-conv-GN
    y = gelu(group_norm(conv3x3(y, w2a_ref), n2a, g2a_ref, b2a_ref))
    y = group_norm(conv3x3(y, w2b_ref), n2b, g2b_ref, b2b_ref)

    # + time-embedding (precomputed in the wrapper), broadcast over HW lanes.
    o_ref[0] = y + emb_ref[0]


# ---------------------------------------------------------------------------
# Wrapper helpers
# ---------------------------------------------------------------------------
def _interp_matrix(n_in, n_out):
    """1-D linear-interpolation weights [n_out, n_in], align_corners=True."""
    denom = max(n_out - 1, 1)
    pos = np.arange(n_out, dtype=np.float64) * (n_in - 1) / denom
    lo = np.clip(np.floor(pos).astype(np.int64), 0, max(n_in - 2, 0))
    hi = np.minimum(lo + 1, n_in - 1)
    frac = pos - lo
    u = np.zeros((n_out, n_in), np.float64)
    u[np.arange(n_out), lo] += 1.0 - frac
    u[np.arange(n_out), hi] += frac
    return u


# ---------------------------------------------------------------------------
# Up.forward wrapper (NCHW in / NCHW out, like PyTorch)
# ---------------------------------------------------------------------------
@jax.jit
def up_forward(params, x, skip_x, t):
    # x: [B, Cx, H, W]; skip_x: [B, Cs, 2H, 2W]; t: [B, E] -> [B, Cout, 2H, 2W]
    B, Cx, H, W = x.shape
    Cs = skip_x.shape[1]
    Ho, Wo = 2 * H, 2 * W
    HW, HWi = Ho * Wo, H * W

    C1 = params["w1a"].shape[-1]
    Cmid = params["w2a"].shape[-1]
    Cout = params["w2b"].shape[-1]
    CsP, CxP = _round_up(Cs, 8), _round_up(Cx, 8)
    C1P, CmidP, CoutP = _round_up(C1, 8), _round_up(Cmid, 8), _round_up(Cout, 8)

    def pad_axis(a, axis, target):
        amt = target - a.shape[axis]
        if amt == 0:
            return a
        widths = [(0, 0)] * a.ndim
        widths[axis] = (0, amt)
        return jnp.pad(a, widths)

    def conv_mat(w_hwio, cin_p, cout_p):
        # [3,3,Cin,Cout] (HWIO) -> [Cout_p, 9*Cin_p], tap-major along K.
        w = pad_axis(pad_axis(w_hwio, 2, cin_p), 3, cout_p)
        return w.reshape(9 * cin_p, cout_p).T

    def gn_col(v, c_p):            # [1, C] -> [C_p, 1]; pads are zero
        return pad_axis(v, 1, c_p).T

    # conv1a consumes concat([skip, up(x)]): pad the two input-channel groups
    # separately so the in-kernel sublane concat stays 8-aligned.
    w1a = params["w1a"]
    w1a_split = jnp.concatenate(
        [pad_axis(w1a[:, :, :Cs, :], 2, CsP), pad_axis(w1a[:, :, Cs:, :], 2, CxP)],
        axis=2)
    w1a_mat = pad_axis(w1a_split, 3, C1P).reshape(9 * (CsP + CxP), C1P).T
    w1b_mat = conv_mat(params["w1b"], C1P, C1P)
    w2a_mat = conv_mat(params["w2a"], C1P, CmidP)
    w2b_mat = conv_mat(params["w2b"], CmidP, CoutP)

    g1a, b1a = gn_col(params["g1a"], C1P), gn_col(params["be1a"], C1P)
    g1b, b1b = gn_col(params["g1b"], C1P), gn_col(params["be1b"], C1P)
    g2a, b2a = gn_col(params["g2a"], CmidP), gn_col(params["be2a"], CmidP)
    g2b, b2b = gn_col(params["g2b"], CoutP), gn_col(params["be2b"], CoutP)

    # emb = Linear(SiLU(t)) for the whole batch: one tiny XLA matmul.
    silu = t * jax.nn.sigmoid(t)
    emb = silu @ params["emb_w"] + params["emb_b"]               # [B, Cout]
    emb = pad_axis(emb, 1, CoutP)[:, :, None]                    # [B, CoutP, 1]

    # Bilinear 2x (align_corners=True) upsample as a flat [HWi, HW] matrix.
    mt = jnp.asarray(
        np.kron(_interp_matrix(H, Ho), _interp_matrix(W, Wo)).T, jnp.float32)

    # NCHW inputs flatten directly to channels-on-sublanes / HW-on-lanes.
    sk = pad_axis(skip_x.reshape(B, Cs, HW), 1, CsP)             # [B, CsP, HW]
    xf = pad_axis(x.reshape(B, Cx, HWi), 1, CxP)                 # [B, CxP, HWi]

    def cspec(shape):              # grid-invariant (weights / constants), 2-D
        return pl.BlockSpec(shape, lambda b: (0, 0))

    kernel = functools.partial(
        _fused_up_kernel, W=Wo, HW=HW,
        n1a=C1 * HW, n1b=C1 * HW, n2a=Cmid * HW, n2b=Cout * HW)

    out = pl.pallas_call(
        kernel,
        out_shape=jax.ShapeDtypeStruct((B, CoutP, HW), jnp.float32),
        grid=(B,),
        in_specs=[
            pl.BlockSpec((1, CsP, HW), lambda b: (b, 0, 0)),
            pl.BlockSpec((1, CxP, HWi), lambda b: (b, 0, 0)),
            pl.BlockSpec((1, CoutP, 1), lambda b: (b, 0, 0)),
            cspec((HWi, HW)),
            cspec((C1P, 9 * (CsP + CxP))), cspec((C1P, 1)), cspec((C1P, 1)),
            cspec((C1P, 9 * C1P)), cspec((C1P, 1)), cspec((C1P, 1)),
            cspec((CmidP, 9 * C1P)), cspec((CmidP, 1)), cspec((CmidP, 1)),
            cspec((CoutP, 9 * CmidP)), cspec((CoutP, 1)), cspec((CoutP, 1)),
        ],
        out_specs=pl.BlockSpec((1, CoutP, HW), lambda b: (b, 0, 0)),
        compiler_params=pltpu.CompilerParams(
            dimension_semantics=("parallel",),    # batch -> both v7x TensorCores
            vmem_limit_bytes=32 * 1024 * 1024,
        ),
    )(sk, xf, emb, mt,
      w1a_mat, g1a, b1a, w1b_mat, g1b, b1b,
      w2a_mat, g2a, b2a, w2b_mat, g2b, b2b)

    # [B, CoutP, HW] -> NCHW; the reshape is free, no transpose anywhere.
    return out[:, :Cout, :].reshape(B, Cout, Ho, Wo)


# ---------------------------------------------------------------------------
# Pure-JAX reference (validation) + deterministic parameter init
# ---------------------------------------------------------------------------
def _upsample2x_bilinear_align_corners(x):
    """[B, H, W, C] -> [B, 2H, 2W, C]; matches nn.Upsample(2,'bilinear',True)."""
    B, H, W, C = x.shape
    Ho, Wo = 2 * H, 2 * W

    def coords(n_in, n_out):
        pos = jnp.arange(n_out, dtype=jnp.float32) * (n_in - 1) / (n_out - 1)
        lo = jnp.clip(jnp.floor(pos).astype(jnp.int32), 0, max(n_in - 2, 0))
        frac = pos - lo.astype(jnp.float32)
        return lo, jnp.minimum(lo + 1, n_in - 1), frac

    y0, y1, fy = coords(H, Ho)
    x0, x1, fx = coords(W, Wo)
    ry = x[:, y0] * (1.0 - fy)[None, :, None, None] + x[:, y1] * fy[None, :, None, None]
    return (ry[:, :, x0] * (1.0 - fx)[None, None, :, None]
            + ry[:, :, x1] * fx[None, None, :, None])


def reference_forward(params, x, skip_x, t):
    xh = jnp.transpose(x, (0, 2, 3, 1))
    sh = jnp.transpose(skip_x, (0, 2, 3, 1))
    h = jnp.concatenate([sh, _upsample2x_bilinear_align_corners(xh)], axis=-1)

    def conv(h, w):
        return jax.lax.conv_general_dilated(
            h, w, (1, 1), "SAME", dimension_numbers=("NHWC", "HWIO", "NHWC"))

    def gn(h, gamma, beta):
        m = jnp.mean(h, axis=(1, 2, 3), keepdims=True)
        v = jnp.mean((h - m) ** 2, axis=(1, 2, 3), keepdims=True)
        return ((h - m) / jnp.sqrt(v + GN_EPS) * gamma.reshape(1, 1, 1, -1)
                + beta.reshape(1, 1, 1, -1))

    def gelu(h):
        return 0.5 * h * (1.0 + jax.lax.erf(h * INV_SQRT2))

    h = gelu(gn(conv(h, params["w1a"]), params["g1a"], params["be1a"]))
    h = gn(conv(h, params["w1b"]), params["g1b"], params["be1b"])
    h = gelu(gn(conv(h, params["w2a"]), params["g2a"], params["be2a"]))
    h = gn(conv(h, params["w2b"]), params["g2b"], params["be2b"])
    silu = t * jax.nn.sigmoid(t)
    emb = silu @ params["emb_w"] + params["emb_b"]
    return jnp.transpose(h + emb[:, None, None, :], (0, 3, 1, 2))


def init_params(key, in_ch, out_ch, emb_dim):
    mid2 = in_ch // 2
    ks = jax.random.split(key, 10)

    def conv_w(k, cin, cout):  # HWIO
        return jax.random.normal(k, (3, 3, cin, cout), jnp.float32) / np.sqrt(9.0 * cin)

    def gn_p(k, c):
        k1, k2 = jax.random.split(k)
        return (1.0 + 0.1 * jax.random.normal(k1, (1, c), jnp.float32),
                0.1 * jax.random.normal(k2, (1, c), jnp.float32))

    p = {}
    p["w1a"] = conv_w(ks[0], in_ch, in_ch); p["g1a"], p["be1a"] = gn_p(ks[1], in_ch)
    p["w1b"] = conv_w(ks[2], in_ch, in_ch); p["g1b"], p["be1b"] = gn_p(ks[3], in_ch)
    p["w2a"] = conv_w(ks[4], in_ch, mid2);  p["g2a"], p["be2a"] = gn_p(ks[5], mid2)
    p["w2b"] = conv_w(ks[6], mid2, out_ch); p["g2b"], p["be2b"] = gn_p(ks[7], out_ch)
    p["emb_w"] = jax.random.normal(ks[8], (emb_dim, out_ch), jnp.float32) / np.sqrt(emb_dim)
    p["emb_b"] = 0.1 * jax.random.normal(ks[9], (1, out_ch), jnp.float32)
    return p


if __name__ == "__main__":
    B, C_x, C_skip, H, W = 2, 4, 4, 8, 8        # x is 8x8, skip is 16x16
    in_channels = C_x + C_skip                  # channels after concat = 8
    out_channels = 8
    emb_dim = 32

    key = jax.random.PRNGKey(0)
    kx, ks, kt, kp = jax.random.split(key, 4)
    x = jax.random.normal(kx, (B, C_x, H, W), jnp.float32)
    skip_x = jax.random.normal(ks, (B, C_skip, 2 * H, 2 * W), jnp.float32)
    t = jax.random.normal(kt, (B, emb_dim), jnp.float32)
    params = init_params(kp, in_channels, out_channels, emb_dim)

    out = jax.block_until_ready(up_forward(params, x, skip_x, t))
    assert out.shape == (B, out_channels, 2 * H, 2 * W), out.shape

    ref = jax.block_until_ready(reference_forward(params, x, skip_x, t))
    max_err = float(jnp.max(jnp.abs(out - ref)))
    assert max_err < 2e-3, f"mismatch vs reference: {max_err}"

    print("KERNEL_OK")
</pallas_src>

<mosaic_0001>
module attributes {stable_mosaic.version = 11 : i64} {
  func.func @_fused_up_kernel(%arg0: i32, %arg1: memref<1x8x256xf32, #tpu.memory_space<vmem>>, %arg2: memref<1x8x64xf32, #tpu.memory_space<vmem>>, %arg3: memref<1x8x1xf32, #tpu.memory_space<vmem>>, %arg4: memref<64x256xf32, #tpu.memory_space<vmem>>, %arg5: memref<8x144xf32, #tpu.memory_space<vmem>>, %arg6: memref<8x1xf32, #tpu.memory_space<vmem>>, %arg7: memref<8x1xf32, #tpu.memory_space<vmem>>, %arg8: memref<8x72xf32, #tpu.memory_space<vmem>>, %arg9: memref<8x1xf32, #tpu.memory_space<vmem>>, %arg10: memref<8x1xf32, #tpu.memory_space<vmem>>, %arg11: memref<8x72xf32, #tpu.memory_space<vmem>>, %arg12: memref<8x1xf32, #tpu.memory_space<vmem>>, %arg13: memref<8x1xf32, #tpu.memory_space<vmem>>, %arg14: memref<8x72xf32, #tpu.memory_space<vmem>>, %arg15: memref<8x1xf32, #tpu.memory_space<vmem>>, %arg16: memref<8x1xf32, #tpu.memory_space<vmem>>, %arg17: memref<1x8x256xf32, #tpu.memory_space<vmem>>) attributes {dimension_semantics = [#tpu.dimension_semantics<parallel>], iteration_bounds = array<i64: 2>, scalar_prefetch = 0 : i64, scratch_operands = 0 : i64, tpu.core_type = #tpu.core_type<tc>, window_params = [{transform_indices = @transform_0, window_bounds = array<i64: 1, 8, 256>}, {transform_indices = @transform_1, window_bounds = array<i64: 1, 8, 64>}, {transform_indices = @transform_2, window_bounds = array<i64: 1, 8, 1>}, {pipeline_mode = #tpu.pipeline_mode<synchronous>, transform_indices = @transform_3, window_bounds = array<i64: 64, 256>}, {pipeline_mode = #tpu.pipeline_mode<synchronous>, transform_indices = @transform_4, window_bounds = array<i64: 8, 144>}, {pipeline_mode = #tpu.pipeline_mode<synchronous>, transform_indices = @transform_5, window_bounds = array<i64: 8, 1>}, {pipeline_mode = #tpu.pipeline_mode<synchronous>, transform_indices = @transform_6, window_bounds = array<i64: 8, 1>}, {pipeline_mode = #tpu.pipeline_mode<synchronous>, transform_indices = @transform_7, window_bounds = array<i64: 8, 72>}, {pipeline_mode = #tpu.pipeline_mode<synchronous>, transform_indices = @transform_8, window_bounds = array<i64: 8, 1>}, {pipeline_mode = #tpu.pipeline_mode<synchronous>, transform_indices = @transform_9, window_bounds = array<i64: 8, 1>}, {pipeline_mode = #tpu.pipeline_mode<synchronous>, transform_indices = @transform_10, window_bounds = array<i64: 8, 72>}, {pipeline_mode = #tpu.pipeline_mode<synchronous>, transform_indices = @transform_11, window_bounds = array<i64: 8, 1>}, {pipeline_mode = #tpu.pipeline_mode<synchronous>, transform_indices = @transform_12, window_bounds = array<i64: 8, 1>}, {pipeline_mode = #tpu.pipeline_mode<synchronous>, transform_indices = @transform_13, window_bounds = array<i64: 8, 72>}, {pipeline_mode = #tpu.pipeline_mode<synchronous>, transform_indices = @transform_14, window_bounds = array<i64: 8, 1>}, {pipeline_mode = #tpu.pipeline_mode<synchronous>, transform_indices = @transform_15, window_bounds = array<i64: 8, 1>}, {transform_indices = @transform_16, window_bounds = array<i64: 1, 8, 256>}]} {
    %0 = tpu.iota {dimensions = array<i32: 1>} : vector<1x256xi32>
    %c16_i32 = arith.constant 16 : i32
    %c0_i32 = arith.constant 0 : i32
    %1 = arith.cmpi eq, %c16_i32, %c0_i32 : i32
    %c1_i32 = arith.constant 1 : i32
    %2 = arith.select %1, %c1_i32, %c16_i32 : i32
    %3 = vector.broadcast %2 : i32 to vector<1x256xi32>
    %4 = arith.remsi %0, %3 : vector<1x256xi32>
    %c0_i32_0 = arith.constant 0 : i32
    %5 = vector.broadcast %c0_i32_0 : i32 to vector<1x256xi32>
    %6 = arith.cmpi ne, %4, %5 : vector<1x256xi32>
    %c0_i32_1 = arith.constant 0 : i32
    %7 = vector.broadcast %c0_i32_1 : i32 to vector<1x256xi32>
    %8 = arith.cmpi slt, %4, %7 : vector<1x256xi32>
    %c0_i32_2 = arith.constant 0 : i32
    %9 = arith.cmpi slt, %2, %c0_i32_2 : i32
    %10 = vector.broadcast %9 : i1 to vector<1x256xi1>
    %11 = vector.broadcast %10 : vector<1x256xi1> to vector<1x256xi1>
    %12 = arith.xori %8, %11 : vector<1x256xi1>
    %13 = arith.andi %12, %6 : vector<1x256xi1>
    %14 = vector.broadcast %2 : i32 to vector<1x256xi32>
    %15 = arith.addi %4, %14 : vector<1x256xi32>
    %16 = arith.select %13, %15, %4 : vector<1x256xi1>, vector<1x256xi32>
    %c1_i32_3 = arith.constant 1 : i32
    %17 = vector.broadcast %c1_i32_3 : i32 to vector<1x256xi32>
    %18 = arith.cmpi sge, %16, %17 : vector<1x256xi32>
    %c14_i32 = arith.constant 14 : i32
    %19 = vector.broadcast %c14_i32 : i32 to vector<1x256xi32>
    %20 = arith.cmpi sle, %16, %19 : vector<1x256xi32>
    %c0 = arith.constant 0 : index
    %c0_4 = arith.constant 0 : index
    %c0_5 = arith.constant 0 : index
    %21 = vector.load %arg2[%c0, %c0_4, %c0_5] : memref<1x8x64xf32, #tpu.memory_space<vmem>>, vector<1x8x64xf32>
    %22 = vector.shape_cast %21 : vector<1x8x64xf32> to vector<8x64xf32>
    %c0_6 = arith.constant 0 : index
    %c0_7 = arith.constant 0 : index
    %23 = vector.load %arg4[%c0_6, %c0_7] : memref<64x256xf32, #tpu.memory_space<vmem>>, vector<64x256xf32>
    %cst = arith.constant dense<0.000000e+00> : vector<8x256xf32>
    %24 = tpu.matmul %22, %23, %cst {dimension_numbers = #tpu.dot_dimension_numbers<[1], [0], [0], [1], [0, 0, 1, 1], [], []>} : vector<8x64xf32>, vector<64x256xf32>, vector<8x256xf32> -> vector<8x256xf32>
    %c0_8 = arith.constant 0 : index
    %c0_9 = arith.constant 0 : index
    %c0_10 = arith.constant 0 : index
    %25 = vector.load %arg1[%c0_8, %c0_9, %c0_10] : memref<1x8x256xf32, #tpu.memory_space<vmem>>, vector<1x8x256xf32>
    %26 = vector.shape_cast %25 : vector<1x8x256xf32> to vector<8x256xf32>
    %27 = tpu.concatenate %26, %24 in 0 : vector<8x256xf32>, vector<8x256xf32> -> vector<16x256xf32>
    %cst_11 = arith.constant 0.000000e+00 : f32
    %28 = vector.broadcast %cst_11 : f32 to vector<16x128xf32>
    %29 = tpu.concatenate %28, %27, %28 in 1 : vector<16x128xf32>, vector<16x256xf32>, vector<16x128xf32> -> vector<16x512xf32>
    %30 = vector.extract_strided_slice %29 {offsets = [0, 111], sizes = [16, 256], strides = [1, 1]} : vector<16x512xf32> to vector<16x256xf32>
    %cst_12 = arith.constant 0.000000e+00 : f32
    %31 = vector.shape_cast %18 : vector<1x256xi1> to vector<1x256xi1>
    %32 = vector.broadcast %31 : vector<1x256xi1> to vector<16x256xi1>
    %33 = vector.broadcast %cst_12 : f32 to vector<16x256xf32>
    %34 = arith.select %32, %30, %33 : vector<16x256xi1>, vector<16x256xf32>
    %35 = vector.extract_strided_slice %29 {offsets = [0, 112], sizes = [16, 256], strides = [1, 1]} : vector<16x512xf32> to vector<16x256xf32>
    %36 = vector.extract_strided_slice %29 {offsets = [0, 113], sizes = [16, 256], strides = [1, 1]} : vector<16x512xf32> to vector<16x256xf32>
    %cst_13 = arith.constant 0.000000e+00 : f32
    %37 = vector.shape_cast %20 : vector<1x256xi1> to vector<1x256xi1>
    %38 = vector.broadcast %37 : vector<1x256xi1> to vector<16x256xi1>
    %39 = vector.broadcast %cst_13 : f32 to vector<16x256xf32>
    %40 = arith.select %38, %36, %39 : vector<16x256xi1>, vector<16x256xf32>
    %41 = vector.extract_strided_slice %29 {offsets = [0, 127], sizes = [16, 256], strides = [1, 1]} : vector<16x512xf32> to vector<16x256xf32>
    %cst_14 = arith.constant 0.000000e+00 : f32
    %42 = vector.shape_cast %18 : vector<1x256xi1> to vector<1x256xi1>
    %43 = vector.broadcast %42 : vector<1x256xi1> to vector<16x256xi1>
    %44 = vector.broadcast %cst_14 : f32 to vector<16x256xf32>
    %45 = arith.select %43, %41, %44 : vector<16x256xi1>, vector<16x256xf32>
    %46 = vector.extract_strided_slice %29 {offsets = [0, 129], sizes = [16, 256], strides = [1, 1]} : vector<16x512xf32> to vector<16x256xf32>
    %cst_15 = arith.constant 0.000000e+00 : f32
    %47 = vector.shape_cast %20 : vector<1x256xi1> to vector<1x256xi1>
    %48 = vector.broadcast %47 : vector<1x256xi1> to vector<16x256xi1>
    %49 = vector.broadcast %cst_15 : f32 to vector<16x256xf32>
    %50 = arith.select %48, %46, %49 : vector<16x256xi1>, vector<16x256xf32>
    %51 = vector.extract_strided_slice %29 {offsets = [0, 143], sizes = [16, 256], strides = [1, 1]} : vector<16x512xf32> to vector<16x256xf32>
    %cst_16 = arith.constant 0.000000e+00 : f32
    %52 = vector.shape_cast %18 : vector<1x256xi1> to vector<1x256xi1>
    %53 = vector.broadcast %52 : vector<1x256xi1> to vector<16x256xi1>
    %54 = vector.broadcast %cst_16 : f32 to vector<16x256xf32>
    %55 = arith.select %53, %51, %54 : vector<16x256xi1>, vector<16x256xf32>
    %56 = vector.extract_strided_slice %29 {offsets = [0, 144], sizes = [16, 256], strides = [1, 1]} : vector<16x512xf32> to vector<16x256xf32>
    %57 = vector.extract_strided_slice %29 {offsets = [0, 145], sizes = [16, 256], strides = [1, 1]} : vector<16x512xf32> to vector<16x256xf32>
    %cst_17 = arith.constant 0.000000e+00 : f32
    %58 = vector.shape_cast %20 : vector<1x256xi1> to vector<1x256xi1>
    %59 = vector.broadcast %58 : vector<1x256xi1> to vector<16x256xi1>
    %60 = vector.broadcast %cst_17 : f32 to vector<16x256xf32>
    %61 = arith.select %59, %57, %60 : vector<16x256xi1>, vector<16x256xf32>
    %62 = tpu.concatenate %34, %35, %40, %45, %27, %50, %55, %56, %61 in 0 : vector<16x256xf32>, vector<16x256xf32>, vector<16x256xf32>, vector<16x256xf32>, vector<16x256xf32>, vector<16x256xf32>, vector<16x256xf32>, vector<16x256xf32>, vector<16x256xf32> -> vector<144x256xf32>
    %c0_18 = arith.constant 0 : index
    %c0_19 = arith.constant 0 : index
    %63 = vector.load %arg5[%c0_18, %c0_19] : memref<8x144xf32, #tpu.memory_space<vmem>>, vector<8x144xf32>
    %cst_20 = arith.constant dense<0.000000e+00> : vector<8x256xf32>
    %64 = tpu.matmul %63, %62, %cst_20 {dimension_numbers = #tpu.dot_dimension_numbers<[1], [0], [0], [1], [0, 0, 1, 1], [], []>} : vector<8x144xf32>, vector<144x256xf32>, vector<8x256xf32> -> vector<8x256xf32>
    %65 = vector.shape_cast %64 : vector<8x256xf32> to vector<1x8x256xf32>
    %cst_21 = arith.constant dense<0.000000e+00> : vector<1xf32>
    %66 = vector.multi_reduction <add>, %65, %cst_21 [1, 2] : vector<1x8x256xf32> to vector<1xf32>
    %67 = vector.shape_cast %66 : vector<1xf32> to vector<1x1x1xf32>
    %68 = vector.extract %67[0, 0, 0] : f32 from vector<1x1x1xf32>
    %69 = vector.broadcast %68 : f32 to vector<1x1xf32>
    %70 = arith.mulf %64, %64 : vector<8x256xf32>
    %71 = vector.shape_cast %70 : vector<8x256xf32> to vector<1x8x256xf32>
    %cst_22 = arith.constant dense<0.000000e+00> : vector<1xf32>
    %72 = vector.multi_reduction <add>, %71, %cst_22 [1, 2] : vector<1x8x256xf32> to vector<1xf32>
    %73 = vector.shape_cast %72 : vector<1xf32> to vector<1x1x1xf32>
    %74 = vector.extract %73[0, 0, 0] : f32 from vector<1x1x1xf32>
    %75 = vector.broadcast %74 : f32 to vector<1x1xf32>
    %cst_23 = arith.constant 2.048000e+03 : f32
    %76 = vector.broadcast %cst_23 : f32 to vector<1x1xf32>
    %77 = arith.divf %69, %76 : vector<1x1xf32>
    %cst_24 = arith.constant 2.048000e+03 : f32
    %78 = vector.broadcast %cst_24 : f32 to vector<1x1xf32>
    %79 = arith.divf %75, %78 : vector<1x1xf32>
    %80 = arith.mulf %77, %77 : vector<1x1xf32>
    %81 = arith.subf %79, %80 : vector<1x1xf32>
    %cst_25 = arith.constant 0.000000e+00 : f32
    %82 = vector.broadcast %cst_25 : f32 to vector<1x1xf32>
    %83 = arith.maximumf %81, %82 : vector<1x1xf32>
    %84 = vector.broadcast %77 : vector<1x1xf32> to vector<8x256xf32>
    %85 = arith.subf %64, %84 : vector<8x256xf32>
    %cst_26 = arith.constant 9.99999974E-6 : f32
    %86 = vector.broadcast %cst_26 : f32 to vector<1x1xf32>
    %87 = arith.addf %83, %86 : vector<1x1xf32>
    %88 = math.rsqrt %87 : vector<1x1xf32>
    %89 = vector.broadcast %88 : vector<1x1xf32> to vector<8x256xf32>
    %90 = arith.mulf %85, %89 : vector<8x256xf32>
    %c0_27 = arith.constant 0 : index
    %c0_28 = arith.constant 0 : index
    %91 = vector.load %arg6[%c0_27, %c0_28] : memref<8x1xf32, #tpu.memory_space<vmem>>, vector<8x1xf32>
    %92 = vector.broadcast %91 : vector<8x1xf32> to vector<8x256xf32>
    %93 = arith.mulf %90, %92 : vector<8x256xf32>
    %c0_29 = arith.constant 0 : index
    %c0_30 = arith.constant 0 : index
    %94 = vector.load %arg7[%c0_29, %c0_30] : memref<8x1xf32, #tpu.memory_space<vmem>>, vector<8x1xf32>
    %95 = vector.broadcast %94 : vector<8x1xf32> to vector<8x256xf32>
    %96 = arith.addf %93, %95 : vector<8x256xf32>
    %cst_31 = arith.constant 0.707106769 : f32
    %97 = vector.broadcast %cst_31 : f32 to vector<8x256xf32>
    %98 = arith.mulf %96, %97 : vector<8x256xf32>
    %99 = math.absf %98 : vector<8x256xf32>
    %cst_32 = arith.constant 0.327591091 : f32
    %100 = vector.broadcast %cst_32 : f32 to vector<8x256xf32>
    %101 = arith.mulf %100, %99 : vector<8x256xf32>
    %cst_33 = arith.constant 1.000000e+00 : f32
    %102 = vector.broadcast %cst_33 : f32 to vector<8x256xf32>
    %103 = arith.addf %102, %101 : vector<8x256xf32>
    %cst_34 = arith.constant 1.000000e+00 : f32
    %104 = vector.broadcast %cst_34 : f32 to vector<8x256xf32>
    %105 = arith.divf %104, %103 : vector<8x256xf32>
    %cst_35 = arith.constant 1.06140542 : f32
    %106 = vector.broadcast %cst_35 : f32 to vector<8x256xf32>
    %107 = arith.mulf %106, %105 : vector<8x256xf32>
    %cst_36 = arith.constant 1.45315206 : f32
    %108 = vector.broadcast %cst_36 : f32 to vector<8x256xf32>
    %109 = arith.subf %107, %108 : vector<8x256xf32>
    %110 = arith.mulf %109, %105 : vector<8x256xf32>
    %cst_37 = arith.constant 1.42141378 : f32
    %111 = vector.broadcast %cst_37 : f32 to vector<8x256xf32>
    %112 = arith.addf %110, %111 : vector<8x256xf32>
    %113 = arith.mulf %112, %105 : vector<8x256xf32>
    %cst_38 = arith.constant 0.284496725 : f32
    %114 = vector.broadcast %cst_38 : f32 to vector<8x256xf32>
    %115 = arith.subf %113, %114 : vector<8x256xf32>
    %116 = arith.mulf %115, %105 : vector<8x256xf32>
    %cst_39 = arith.constant 0.254829586 : f32
    %117 = vector.broadcast %cst_39 : f32 to vector<8x256xf32>
    %118 = arith.addf %116, %117 : vector<8x256xf32>
    %119 = arith.mulf %118, %105 : vector<8x256xf32>
    %cst_40 = arith.constant 0.000000e+00 : f32
    %120 = vector.broadcast %cst_40 : f32 to vector<8x256xf32>
    %121 = arith.subf %120, %99 : vector<8x256xf32>
    %122 = arith.mulf %121, %99 : vector<8x256xf32>
    %123 = math.exp %122 : vector<8x256xf32>
    %124 = arith.mulf %119, %123 : vector<8x256xf32>
    %cst_41 = arith.constant 1.000000e+00 : f32
    %125 = vector.broadcast %cst_41 : f32 to vector<8x256xf32>
    %126 = arith.subf %125, %124 : vector<8x256xf32>
    %cst_42 = arith.constant 0.000000e+00 : f32
    %127 = vector.broadcast %cst_42 : f32 to vector<8x256xf32>
    %128 = arith.cmpf olt, %98, %127 : vector<8x256xf32>
    %cst_43 = arith.constant 0.000000e+00 : f32
    %129 = vector.broadcast %cst_43 : f32 to vector<8x256xf32>
    %130 = arith.subf %129, %126 : vector<8x256xf32>
    %131 = arith.select %128, %130, %126 : vector<8x256xi1>, vector<8x256xf32>
    %cst_44 = arith.constant 5.000000e-01 : f32
    %132 = vector.broadcast %cst_44 : f32 to vector<8x256xf32>
    %133 = arith.mulf %132, %96 : vector<8x256xf32>
    %cst_45 = arith.constant 1.000000e+00 : f32
    %134 = vector.broadcast %cst_45 : f32 to vector<8x256xf32>
    %135 = arith.addf %134, %131 : vector<8x256xf32>
    %136 = arith.mulf %133, %135 : vector<8x256xf32>
    %cst_46 = arith.constant 0.000000e+00 : f32
    %137 = vector.broadcast %cst_46 : f32 to vector<8x128xf32>
    %138 = tpu.concatenate %137, %136, %137 in 1 : vector<8x128xf32>, vector<8x256xf32>, vector<8x128xf32> -> vector<8x512xf32>
    %139 = vector.extract_strided_slice %138 {offsets = [0, 111], sizes = [8, 256], strides = [1, 1]} : vector<8x512xf32> to vector<8x256xf32>
    %cst_47 = arith.constant 0.000000e+00 : f32
    %140 = vector.shape_cast %18 : vector<1x256xi1> to vector<1x256xi1>
    %141 = vector.broadcast %140 : vector<1x256xi1> to vector<8x256xi1>
    %142 = vector.broadcast %cst_47 : f32 to vector<8x256xf32>
    %143 = arith.select %141, %139, %142 : vector<8x256xi1>, vector<8x256xf32>
    %144 = vector.extract_strided_slice %138 {offsets = [0, 112], sizes = [8, 256], strides = [1, 1]} : vector<8x512xf32> to vector<8x256xf32>
    %145 = vector.extract_strided_slice %138 {offsets = [0, 113], sizes = [8, 256], strides = [1, 1]} : vector<8x512xf32> to vector<8x256xf32>
    %cst_48 = arith.constant 0.000000e+00 : f32
    %146 = vector.shape_cast %20 : vector<1x256xi1> to vector<1x256xi1>
    %147 = vector.broadcast %146 : vector<1x256xi1> to vector<8x256xi1>
    %148 = vector.broadcast %cst_48 : f32 to vector<8x256xf32>
    %149 = arith.select %147, %145, %148 : vector<8x256xi1>, vector<8x256xf32>
    %150 = vector.extract_strided_slice %138 {offsets = [0, 127], sizes = [8, 256], strides = [1, 1]} : vector<8x512xf32> to vector<8x256xf32>
    %cst_49 = arith.constant 0.000000e+00 : f32
    %151 = vector.shape_cast %18 : vector<1x256xi1> to vector<1x256xi1>
    %152 = vector.broadcast %151 : vector<1x256xi1> to vector<8x256xi1>
    %153 = vector.broadcast %cst_49 : f32 to vector<8x256xf32>
    %154 = arith.select %152, %150, %153 : vector<8x256xi1>, vector<8x256xf32>
    %155 = vector.extract_strided_slice %138 {offsets = [0, 129], sizes = [8, 256], strides = [1, 1]} : vector<8x512xf32> to vector<8x256xf32>
    %cst_50 = arith.constant 0.000000e+00 : f32
    %156 = vector.shape_cast %20 : vector<1x256xi1> to vector<1x256xi1>
    %157 = vector.broadcast %156 : vector<1x256xi1> to vector<8x256xi1>
    %158 = vector.broadcast %cst_50 : f32 to vector<8x256xf32>
    %159 = arith.select %157, %155, %158 : vector<8x256xi1>, vector<8x256xf32>
    %160 = vector.extract_strided_slice %138 {offsets = [0, 143], sizes = [8, 256], strides = [1, 1]} : vector<8x512xf32> to vector<8x256xf32>
    %cst_51 = arith.constant 0.000000e+00 : f32
    %161 = vector.shape_cast %18 : vector<1x256xi1> to vector<1x256xi1>
    %162 = vector.broadcast %161 : vector<1x256xi1> to vector<8x256xi1>
    %163 = vector.broadcast %cst_51 : f32 to vector<8x256xf32>
    %164 = arith.select %162, %160, %163 : vector<8x256xi1>, vector<8x256xf32>
    %165 = vector.extract_strided_slice %138 {offsets = [0, 144], sizes = [8, 256], strides = [1, 1]} : vector<8x512xf32> to vector<8x256xf32>
    %166 = vector.extract_strided_slice %138 {offsets = [0, 145], sizes = [8, 256], strides = [1, 1]} : vector<8x512xf32> to vector<8x256xf32>
    %cst_52 = arith.constant 0.000000e+00 : f32
    %167 = vector.shape_cast %20 : vector<1x256xi1> to vector<1x256xi1>
    %168 = vector.broadcast %167 : vector<1x256xi1> to vector<8x256xi1>
    %169 = vector.broadcast %cst_52 : f32 to vector<8x256xf32>
    %170 = arith.select %168, %166, %169 : vector<8x256xi1>, vector<8x256xf32>
    %171 = tpu.concatenate %143, %144, %149, %154, %136, %159, %164, %165, %170 in 0 : vector<8x256xf32>, vector<8x256xf32>, vector<8x256xf32>, vector<8x256xf32>, vector<8x256xf32>, vector<8x256xf32>, vector<8x256xf32>, vector<8x256xf32>, vector<8x256xf32> -> vector<72x256xf32>
    %c0_53 = arith.constant 0 : index
    %c0_54 = arith.constant 0 : index
    %172 = vector.load %arg8[%c0_53, %c0_54] : memref<8x72xf32, #tpu.memory_space<vmem>>, vector<8x72xf32>
    %cst_55 = arith.constant dense<0.000000e+00> : vector<8x256xf32>
    %173 = tpu.matmul %172, %171, %cst_55 {dimension_numbers = #tpu.dot_dimension_numbers<[1], [0], [0], [1], [0, 0, 1, 1], [], []>} : vector<8x72xf32>, vector<72x256xf32>, vector<8x256xf32> -> vector<8x256xf32>
    %174 = vector.shape_cast %173 : vector<8x256xf32> to vector<1x8x256xf32>
    %cst_56 = arith.constant dense<0.000000e+00> : vector<1xf32>
    %175 = vector.multi_reduction <add>, %174, %cst_56 [1, 2] : vector<1x8x256xf32> to vector<1xf32>
    %176 = vector.shape_cast %175 : vector<1xf32> to vector<1x1x1xf32>
    %177 = vector.extract %176[0, 0, 0] : f32 from vector<1x1x1xf32>
    %178 = vector.broadcast %177 : f32 to vector<1x1xf32>
    %179 = arith.mulf %173, %173 : vector<8x256xf32>
    %180 = vector.shape_cast %179 : vector<8x256xf32> to vector<1x8x256xf32>
    %cst_57 = arith.constant dense<0.000000e+00> : vector<1xf32>
    %181 = vector.multi_reduction <add>, %180, %cst_57 [1, 2] : vector<1x8x256xf32> to vector<1xf32>
    %182 = vector.shape_cast %181 : vector<1xf32> to vector<1x1x1xf32>
    %183 = vector.extract %182[0, 0, 0] : f32 from vector<1x1x1xf32>
    %184 = vector.broadcast %183 : f32 to vector<1x1xf32>
    %cst_58 = arith.constant 2.048000e+03 : f32
    %185 = vector.broadcast %cst_58 : f32 to vector<1x1xf32>
    %186 = arith.divf %178, %185 : vector<1x1xf32>
    %cst_59 = arith.constant 2.048000e+03 : f32
    %187 = vector.broadcast %cst_59 : f32 to vector<1x1xf32>
    %188 = arith.divf %184, %187 : vector<1x1xf32>
    %189 = arith.mulf %186, %186 : vector<1x1xf32>
    %190 = arith.subf %188, %189 : vector<1x1xf32>
    %cst_60 = arith.constant 0.000000e+00 : f32
    %191 = vector.broadcast %cst_60 : f32 to vector<1x1xf32>
    %192 = arith.maximumf %190, %191 : vector<1x1xf32>
    %193 = vector.broadcast %186 : vector<1x1xf32> to vector<8x256xf32>
    %194 = arith.subf %173, %193 : vector<8x256xf32>
    %cst_61 = arith.constant 9.99999974E-6 : f32
    %195 = vector.broadcast %cst_61 : f32 to vector<1x1xf32>
    %196 = arith.addf %192, %195 : vector<1x1xf32>
    %197 = math.rsqrt %196 : vector<1x1xf32>
    %198 = vector.broadcast %197 : vector<1x1xf32> to vector<8x256xf32>
    %199 = arith.mulf %194, %198 : vector<8x256xf32>
    %c0_62 = arith.constant 0 : index
    %c0_63 = arith.constant 0 : index
    %200 = vector.load %arg9[%c0_62, %c0_63] : memref<8x1xf32, #tpu.memory_space<vmem>>, vector<8x1xf32>
    %201 = vector.broadcast %200 : vector<8x1xf32> to vector<8x256xf32>
    %202 = arith.mulf %199, %201 : vector<8x256xf32>
    %c0_64 = arith.constant 0 : index
    %c0_65 = arith.constant 0 : index
    %203 = vector.load %arg10[%c0_64, %c0_65] : memref<8x1xf32, #tpu.memory_space<vmem>>, vector<8x1xf32>
    %204 = vector.broadcast %203 : vector<8x1xf32> to vector<8x256xf32>
    %205 = arith.addf %202, %204 : vector<8x256xf32>
    %cst_66 = arith.constant 0.000000e+00 : f32
    %206 = vector.broadcast %cst_66 : f32 to vector<8x128xf32>
    %207 = tpu.concatenate %206, %205, %206 in 1 : vector<8x128xf32>, vector<8x256xf32>, vector<8x128xf32> -> vector<8x512xf32>
    %208 = vector.extract_strided_slice %207 {offsets = [0, 111], sizes = [8, 256], strides = [1, 1]} : vector<8x512xf32> to vector<8x256xf32>
    %cst_67 = arith.constant 0.000000e+00 : f32
    %209 = vector.shape_cast %18 : vector<1x256xi1> to vector<1x256xi1>
    %210 = vector.broadcast %209 : vector<1x256xi1> to vector<8x256xi1>
    %211 = vector.broadcast %cst_67 : f32 to vector<8x256xf32>
    %212 = arith.select %210, %208, %211 : vector<8x256xi1>, vector<8x256xf32>
    %213 = vector.extract_strided_slice %207 {offsets = [0, 112], sizes = [8, 256], strides = [1, 1]} : vector<8x512xf32> to vector<8x256xf32>
    %214 = vector.extract_strided_slice %207 {offsets = [0, 113], sizes = [8, 256], strides = [1, 1]} : vector<8x512xf32> to vector<8x256xf32>
    %cst_68 = arith.constant 0.000000e+00 : f32
    %215 = vector.shape_cast %20 : vector<1x256xi1> to vector<1x256xi1>
    %216 = vector.broadcast %215 : vector<1x256xi1> to vector<8x256xi1>
    %217 = vector.broadcast %cst_68 : f32 to vector<8x256xf32>
    %218 = arith.select %216, %214, %217 : vector<8x256xi1>, vector<8x256xf32>
    %219 = vector.extract_strided_slice %207 {offsets = [0, 127], sizes = [8, 256], strides = [1, 1]} : vector<8x512xf32> to vector<8x256xf32>
    %cst_69 = arith.constant 0.000000e+00 : f32
    %220 = vector.shape_cast %18 : vector<1x256xi1> to vector<1x256xi1>
    %221 = vector.broadcast %220 : vector<1x256xi1> to vector<8x256xi1>
    %222 = vector.broadcast %cst_69 : f32 to vector<8x256xf32>
    %223 = arith.select %221, %219, %222 : vector<8x256xi1>, vector<8x256xf32>
    %224 = vector.extract_strided_slice %207 {offsets = [0, 129], sizes = [8, 256], strides = [1, 1]} : vector<8x512xf32> to vector<8x256xf32>
    %cst_70 = arith.constant 0.000000e+00 : f32
    %225 = vector.shape_cast %20 : vector<1x256xi1> to vector<1x256xi1>
    %226 = vector.broadcast %225 : vector<1x256xi1> to vector<8x256xi1>
    %227 = vector.broadcast %cst_70 : f32 to vector<8x256xf32>
    %228 = arith.select %226, %224, %227 : vector<8x256xi1>, vector<8x256xf32>
    %229 = vector.extract_strided_slice %207 {offsets = [0, 143], sizes = [8, 256], strides = [1, 1]} : vector<8x512xf32> to vector<8x256xf32>
    %cst_71 = arith.constant 0.000000e+00 : f32
    %230 = vector.shape_cast %18 : vector<1x256xi1> to vector<1x256xi1>
    %231 = vector.broadcast %230 : vector<1x256xi1> to vector<8x256xi1>
    %232 = vector.broadcast %cst_71 : f32 to vector<8x256xf32>
    %233 = arith.select %231, %229, %232 : vector<8x256xi1>, vector<8x256xf32>
    %234 = vector.extract_strided_slice %207 {offsets = [0, 144], sizes = [8, 256], strides = [1, 1]} : vector<8x512xf32> to vector<8x256xf32>
    %235 = vector.extract_strided_slice %207 {offsets = [0, 145], sizes = [8, 256], strides = [1, 1]} : vector<8x512xf32> to vector<8x256xf32>
    %cst_72 = arith.constant 0.000000e+00 : f32
    %236 = vector.shape_cast %20 : vector<1x256xi1> to vector<1x256xi1>
    %237 = vector.broadcast %236 : vector<1x256xi1> to vector<8x256xi1>
    %238 = vector.broadcast %cst_72 : f32 to vector<8x256xf32>
    %239 = arith.select %237, %235, %238 : vector<8x256xi1>, vector<8x256xf32>
    %240 = tpu.concatenate %212, %213, %218, %223, %205, %228, %233, %234, %239 in 0 : vector<8x256xf32>, vector<8x256xf32>, vector<8x256xf32>, vector<8x256xf32>, vector<8x256xf32>, vector<8x256xf32>, vector<8x256xf32>, vector<8x256xf32>, vector<8x256xf32> -> vector<72x256xf32>
    %c0_73 = arith.constant 0 : index
    %c0_74 = arith.constant 0 : index
    %241 = vector.load %arg11[%c0_73, %c0_74] : memref<8x72xf32, #tpu.memory_space<vmem>>, vector<8x72xf32>
    %cst_75 = arith.constant dense<0.000000e+00> : vector<8x256xf32>
    %242 = tpu.matmul %241, %240, %cst_75 {dimension_numbers = #tpu.dot_dimension_numbers<[1], [0], [0], [1], [0, 0, 1, 1], [], []>} : vector<8x72xf32>, vector<72x256xf32>, vector<8x256xf32> -> vector<8x256xf32>
    %243 = vector.shape_cast %242 : vector<8x256xf32> to vector<1x8x256xf32>
    %cst_76 = arith.constant dense<0.000000e+00> : vector<1xf32>
    %244 = vector.multi_reduction <add>, %243, %cst_76 [1, 2] : vector<1x8x256xf32> to vector<1xf32>
    %245 = vector.shape_cast %244 : vector<1xf32> to vector<1x1x1xf32>
    %246 = vector.extract %245[0, 0, 0] : f32 from vector<1x1x1xf32>
    %247 = vector.broadcast %246 : f32 to vector<1x1xf32>
    %248 = arith.mulf %242, %242 : vector<8x256xf32>
    %249 = vector.shape_cast %248 : vector<8x256xf32> to vector<1x8x256xf32>
    %cst_77 = arith.constant dense<0.000000e+00> : vector<1xf32>
    %250 = vector.multi_reduction <add>, %249, %cst_77 [1, 2] : vector<1x8x256xf32> to vector<1xf32>
    %251 = vector.shape_cast %250 : vector<1xf32> to vector<1x1x1xf32>
    %252 = vector.extract %251[0, 0, 0] : f32 from vector<1x1x1xf32>
    %253 = vector.broadcast %252 : f32 to vector<1x1xf32>
    %cst_78 = arith.constant 1.024000e+03 : f32
    %254 = vector.broadcast %cst_78 : f32 to vector<1x1xf32>
    %255 = arith.divf %247, %254 : vector<1x1xf32>
    %cst_79 = arith.constant 1.024000e+03 : f32
    %256 = vector.broadcast %cst_79 : f32 to vector<1x1xf32>
    %257 = arith.divf %253, %256 : vector<1x1xf32>
    %258 = arith.mulf %255, %255 : vector<1x1xf32>
    %259 = arith.subf %257, %258 : vector<1x1xf32>
    %cst_80 = arith.constant 0.000000e+00 : f32
    %260 = vector.broadcast %cst_80 : f32 to vector<1x1xf32>
    %261 = arith.maximumf %259, %260 : vector<1x1xf32>
    %262 = vector.broadcast %255 : vector<1x1xf32> to vector<8x256xf32>
    %263 = arith.subf %242, %262 : vector<8x256xf32>
    %cst_81 = arith.constant 9.99999974E-6 : f32
    %264 = vector.broadcast %cst_81 : f32 to vector<1x1xf32>
    %265 = arith.addf %261, %264 : vector<1x1xf32>
    %266 = math.rsqrt %265 : vector<1x1xf32>
    %267 = vector.broadcast %266 : vector<1x1xf32> to vector<8x256xf32>
    %268 = arith.mulf %263, %267 : vector<8x256xf32>
    %c0_82 = arith.constant 0 : index
    %c0_83 = arith.constant 0 : index
    %269 = vector.load %arg12[%c0_82, %c0_83] : memref<8x1xf32, #tpu.memory_space<vmem>>, vector<8x1xf32>
    %270 = vector.broadcast %269 : vector<8x1xf32> to vector<8x256xf32>
    %271 = arith.mulf %268, %270 : vector<8x256xf32>
    %c0_84 = arith.constant 0 : index
    %c0_85 = arith.constant 0 : index
    %272 = vector.load %arg13[%c0_84, %c0_85] : memref<8x1xf32, #tpu.memory_space<vmem>>, vector<8x1xf32>
    %273 = vector.broadcast %272 : vector<8x1xf32> to vector<8x256xf32>
    %274 = arith.addf %271, %273 : vector<8x256xf32>
    %cst_86 = arith.constant 0.707106769 : f32
    %275 = vector.broadcast %cst_86 : f32 to vector<8x256xf32>
    %276 = arith.mulf %274, %275 : vector<8x256xf32>
    %277 = math.absf %276 : vector<8x256xf32>
    %cst_87 = arith.constant 0.327591091 : f32
    %278 = vector.broadcast %cst_87 : f32 to vector<8x256xf32>
    %279 = arith.mulf %278, %277 : vector<8x256xf32>
    %cst_88 = arith.constant 1.000000e+00 : f32
    %280 = vector.broadcast %cst_88 : f32 to vector<8x256xf32>
    %281 = arith.addf %280, %279 : vector<8x256xf32>
    %cst_89 = arith.constant 1.000000e+00 : f32
    %282 = vector.broadcast %cst_89 : f32 to vector<8x256xf32>
    %283 = arith.divf %282, %281 : vector<8x256xf32>
    %cst_90 = arith.constant 1.06140542 : f32
    %284 = vector.broadcast %cst_90 : f32 to vector<8x256xf32>
    %285 = arith.mulf %284, %283 : vector<8x256xf32>
    %cst_91 = arith.constant 1.45315206 : f32
    %286 = vector.broadcast %cst_91 : f32 to vector<8x256xf32>
    %287 = arith.subf %285, %286 : vector<8x256xf32>
    %288 = arith.mulf %287, %283 : vector<8x256xf32>
    %cst_92 = arith.constant 1.42141378 : f32
    %289 = vector.broadcast %cst_92 : f32 to vector<8x256xf32>
    %290 = arith.addf %288, %289 : vector<8x256xf32>
    %291 = arith.mulf %290, %283 : vector<8x256xf32>
    %cst_93 = arith.constant 0.284496725 : f32
    %292 = vector.broadcast %cst_93 : f32 to vector<8x256xf32>
    %293 = arith.subf %291, %292 : vector<8x256xf32>
    %294 = arith.mulf %293, %283 : vector<8x256xf32>
    %cst_94 = arith.constant 0.254829586 : f32
    %295 = vector.broadcast %cst_94 : f32 to vector<8x256xf32>
    %296 = arith.addf %294, %295 : vector<8x256xf32>
    %297 = arith.mulf %296, %283 : vector<8x256xf32>
    %cst_95 = arith.constant 0.000000e+00 : f32
    %298 = vector.broadcast %cst_95 : f32 to vector<8x256xf32>
    %299 = arith.subf %298, %277 : vector<8x256xf32>
    %300 = arith.mulf %299, %277 : vector<8x256xf32>
    %301 = math.exp %300 : vector<8x256xf32>
    %302 = arith.mulf %297, %301 : vector<8x256xf32>
    %cst_96 = arith.constant 1.000000e+00 : f32
    %303 = vector.broadcast %cst_96 : f32 to vector<8x256xf32>
    %304 = arith.subf %303, %302 : vector<8x256xf32>
    %cst_97 = arith.constant 0.000000e+00 : f32
    %305 = vector.broadcast %cst_97 : f32 to vector<8x256xf32>
    %306 = arith.cmpf olt, %276, %305 : vector<8x256xf32>
    %cst_98 = arith.constant 0.000000e+00 : f32
    %307 = vector.broadcast %cst_98 : f32 to vector<8x256xf32>
    %308 = arith.subf %307, %304 : vector<8x256xf32>
    %309 = arith.select %306, %308, %304 : vector<8x256xi1>, vector<8x256xf32>
    %cst_99 = arith.constant 5.000000e-01 : f32
    %310 = vector.broadcast %cst_99 : f32 to vector<8x256xf32>
    %311 = arith.mulf %310, %274 : vector<8x256xf32>
    %cst_100 = arith.constant 1.000000e+00 : f32
    %312 = vector.broadcast %cst_100 : f32 to vector<8x256xf32>
    %313 = arith.addf %312, %309 : vector<8x256xf32>
    %314 = arith.mulf %311, %313 : vector<8x256xf32>
    %cst_101 = arith.constant 0.000000e+00 : f32
    %315 = vector.broadcast %cst_101 : f32 to vector<8x128xf32>
    %316 = tpu.concatenate %315, %314, %315 in 1 : vector<8x128xf32>, vector<8x256xf32>, vector<8x128xf32> -> vector<8x512xf32>
    %317 = vector.extract_strided_slice %316 {offsets = [0, 111], sizes = [8, 256], strides = [1, 1]} : vector<8x512xf32> to vector<8x256xf32>
    %cst_102 = arith.constant 0.000000e+00 : f32
    %318 = vector.shape_cast %18 : vector<1x256xi1> to vector<1x256xi1>
    %319 = vector.broadcast %318 : vector<1x256xi1> to vector<8x256xi1>
    %320 = vector.broadcast %cst_102 : f32 to vector<8x256xf32>
    %321 = arith.select %319, %317, %320 : vector<8x256xi1>, vector<8x256xf32>
    %322 = vector.extract_strided_slice %316 {offsets = [0, 112], sizes = [8, 256], strides = [1, 1]} : vector<8x512xf32> to vector<8x256xf32>
    %323 = vector.extract_strided_slice %316 {offsets = [0, 113], sizes = [8, 256], strides = [1, 1]} : vector<8x512xf32> to vector<8x256xf32>
    %cst_103 = arith.constant 0.000000e+00 : f32
    %324 = vector.shape_cast %20 : vector<1x256xi1> to vector<1x256xi1>
    %325 = vector.broadcast %324 : vector<1x256xi1> to vector<8x256xi1>
    %326 = vector.broadcast %cst_103 : f32 to vector<8x256xf32>
    %327 = arith.select %325, %323, %326 : vector<8x256xi1>, vector<8x256xf32>
    %328 = vector.extract_strided_slice %316 {offsets = [0, 127], sizes = [8, 256], strides = [1, 1]} : vector<8x512xf32> to vector<8x256xf32>
    %cst_104 = arith.constant 0.000000e+00 : f32
    %329 = vector.shape_cast %18 : vector<1x256xi1> to vector<1x256xi1>
    %330 = vector.broadcast %329 : vector<1x256xi1> to vector<8x256xi1>
    %331 = vector.broadcast %cst_104 : f32 to vector<8x256xf32>
    %332 = arith.select %330, %328, %331 : vector<8x256xi1>, vector<8x256xf32>
    %333 = vector.extract_strided_slice %316 {offsets = [0, 129], sizes = [8, 256], strides = [1, 1]} : vector<8x512xf32> to vector<8x256xf32>
    %cst_105 = arith.constant 0.000000e+00 : f32
    %334 = vector.shape_cast %20 : vector<1x256xi1> to vector<1x256xi1>
    %335 = vector.broadcast %334 : vector<1x256xi1> to vector<8x256xi1>
    %336 = vector.broadcast %cst_105 : f32 to vector<8x256xf32>
    %337 = arith.select %335, %333, %336 : vector<8x256xi1>, vector<8x256xf32>
    %338 = vector.extract_strided_slice %316 {offsets = [0, 143], sizes = [8, 256], strides = [1, 1]} : vector<8x512xf32> to vector<8x256xf32>
    %cst_106 = arith.constant 0.000000e+00 : f32
    %339 = vector.shape_cast %18 : vector<1x256xi1> to vector<1x256xi1>
    %340 = vector.broadcast %339 : vector<1x256xi1> to vector<8x256xi1>
    %341 = vector.broadcast %cst_106 : f32 to vector<8x256xf32>
    %342 = arith.select %340, %338, %341 : vector<8x256xi1>, vector<8x256xf32>
    %343 = vector.extract_strided_slice %316 {offsets = [0, 144], sizes = [8, 256], strides = [1, 1]} : vector<8x512xf32> to vector<8x256xf32>
    %344 = vector.extract_strided_slice %316 {offsets = [0, 145], sizes = [8, 256], strides = [1, 1]} : vector<8x512xf32> to vector<8x256xf32>
    %cst_107 = arith.constant 0.000000e+00 : f32
    %345 = vector.shape_cast %20 : vector<1x256xi1> to vector<1x256xi1>
    %346 = vector.broadcast %345 : vector<1x256xi1> to vector<8x256xi1>
    %347 = vector.broadcast %cst_107 : f32 to vector<8x256xf32>
    %348 = arith.select %346, %344, %347 : vector<8x256xi1>, vector<8x256xf32>
    %349 = tpu.concatenate %321, %322, %327, %332, %314, %337, %342, %343, %348 in 0 : vector<8x256xf32>, vector<8x256xf32>, vector<8x256xf32>, vector<8x256xf32>, vector<8x256xf32>, vector<8x256xf32>, vector<8x256xf32>, vector<8x256xf32>, vector<8x256xf32> -> vector<72x256xf32>
    %c0_108 = arith.constant 0 : index
    %c0_109 = arith.constant 0 : index
    %350 = vector.load %arg14[%c0_108, %c0_109] : memref<8x72xf32, #tpu.memory_space<vmem>>, vector<8x72xf32>
    %cst_110 = arith.constant dense<0.000000e+00> : vector<8x256xf32>
    %351 = tpu.matmul %350, %349, %cst_110 {dimension_numbers = #tpu.dot_dimension_numbers<[1], [0], [0], [1], [0, 0, 1, 1], [], []>} : vector<8x72xf32>, vector<72x256xf32>, vector<8x256xf32> -> vector<8x256xf32>
    %352 = vector.shape_cast %351 : vector<8x256xf32> to vector<1x8x256xf32>
    %cst_111 = arith.constant dense<0.000000e+00> : vector<1xf32>
    %353 = vector.multi_reduction <add>, %352, %cst_111 [1, 2] : vector<1x8x256xf32> to vector<1xf32>
    %354 = vector.shape_cast %353 : vector<1xf32> to vector<1x1x1xf32>
    %355 = vector.extract %354[0, 0, 0] : f32 from vector<1x1x1xf32>
    %356 = vector.broadcast %355 : f32 to vector<1x1xf32>
    %357 = arith.mulf %351, %351 : vector<8x256xf32>
    %358 = vector.shape_cast %357 : vector<8x256xf32> to vector<1x8x256xf32>
    %cst_112 = arith.constant dense<0.000000e+00> : vector<1xf32>
    %359 = vector.multi_reduction <add>, %358, %cst_112 [1, 2] : vector<1x8x256xf32> to vector<1xf32>
    %360 = vector.shape_cast %359 : vector<1xf32> to vector<1x1x1xf32>
    %361 = vector.extract %360[0, 0, 0] : f32 from vector<1x1x1xf32>
    %362 = vector.broadcast %361 : f32 to vector<1x1xf32>
    %cst_113 = arith.constant 2.048000e+03 : f32
    %363 = vector.broadcast %cst_113 : f32 to vector<1x1xf32>
    %364 = arith.divf %356, %363 : vector<1x1xf32>
    %cst_114 = arith.constant 2.048000e+03 : f32
    %365 = vector.broadcast %cst_114 : f32 to vector<1x1xf32>
    %366 = arith.divf %362, %365 : vector<1x1xf32>
    %367 = arith.mulf %364, %364 : vector<1x1xf32>
    %368 = arith.subf %366, %367 : vector<1x1xf32>
    %cst_115 = arith.constant 0.000000e+00 : f32
    %369 = vector.broadcast %cst_115 : f32 to vector<1x1xf32>
    %370 = arith.maximumf %368, %369 : vector<1x1xf32>
    %371 = vector.broadcast %364 : vector<1x1xf32> to vector<8x256xf32>
    %372 = arith.subf %351, %371 : vector<8x256xf32>
    %cst_116 = arith.constant 9.99999974E-6 : f32
    %373 = vector.broadcast %cst_116 : f32 to vector<1x1xf32>
    %374 = arith.addf %370, %373 : vector<1x1xf32>
    %375 = math.rsqrt %374 : vector<1x1xf32>
    %376 = vector.broadcast %375 : vector<1x1xf32> to vector<8x256xf32>
    %377 = arith.mulf %372, %376 : vector<8x256xf32>
    %c0_117 = arith.constant 0 : index
    %c0_118 = arith.constant 0 : index
    %378 = vector.load %arg15[%c0_117, %c0_118] : memref<8x1xf32, #tpu.memory_space<vmem>>, vector<8x1xf32>
    %379 = vector.broadcast %378 : vector<8x1xf32> to vector<8x256xf32>
    %380 = arith.mulf %377, %379 : vector<8x256xf32>
    %c0_119 = arith.constant 0 : index
    %c0_120 = arith.constant 0 : index
    %381 = vector.load %arg16[%c0_119, %c0_120] : memref<8x1xf32, #tpu.memory_space<vmem>>, vector<8x1xf32>
    %382 = vector.broadcast %381 : vector<8x1xf32> to vector<8x256xf32>
    %383 = arith.addf %380, %382 : vector<8x256xf32>
    %c0_121 = arith.constant 0 : index
    %c0_122 = arith.constant 0 : index
    %c0_123 = arith.constant 0 : index
    %384 = vector.load %arg3[%c0_121, %c0_122, %c0_123] : memref<1x8x1xf32, #tpu.memory_space<vmem>>, vector<1x8x1xf32>
    %385 = vector.shape_cast %384 : vector<1x8x1xf32> to vector<8x1xf32>
    %386 = vector.broadcast %385 : vector<8x1xf32> to vector<8x256xf32>
    %387 = arith.addf %383, %386 : vector<8x256xf32>
    %c0_124 = arith.constant 0 : index
    %c0_125 = arith.constant 0 : index
    %c0_126 = arith.constant 0 : index
    %388 = vector.load %arg17[%c0_124, %c0_125, %c0_126] : memref<1x8x256xf32, #tpu.memory_space<vmem>>, vector<1x8x256xf32>
    %389 = vector.shape_cast %388 : vector<1x8x256xf32> to vector<8x256xf32>
    %390 = vector.shape_cast %387 : vector<8x256xf32> to vector<1x8x256xf32>
    tpu.vector_store %arg17[%c0_124, %c0_125, %c0_126], %390 {strides = array<i32>} : memref<1x8x256xf32, #tpu.memory_space<vmem>>, vector<1x8x256xf32>,
    return
  }
  func.func @transform_0(%arg0: i32) -> (i32, i32, i32) {
    %c0_i32 = arith.constant 0 : i32
    %c0_i32_0 = arith.constant 0 : i32
    %c0_i32_1 = arith.constant 0 : i32
    return %arg0, %c0_i32, %c0_i32_0 : i32, i32, i32
  }
  func.func @transform_1(%arg0: i32) -> (i32, i32, i32) {
    %c0_i32 = arith.constant 0 : i32
    %c0_i32_0 = arith.constant 0 : i32
    %c0_i32_1 = arith.constant 0 : i32
    return %arg0, %c0_i32, %c0_i32_0 : i32, i32, i32
  }
  func.func @transform_2(%arg0: i32) -> (i32, i32, i32) {
    %c0_i32 = arith.constant 0 : i32
    %c0_i32_0 = arith.constant 0 : i32
    %c0_i32_1 = arith.constant 0 : i32
    return %arg0, %c0_i32, %c0_i32_0 : i32, i32, i32
  }
  func.func @transform_3(%arg0: i32) -> (i32, i32) {
    %c0_i32 = arith.constant 0 : i32
    %c0_i32_0 = arith.constant 0 : i32
    %c0_i32_1 = arith.constant 0 : i32
    return %c0_i32, %c0_i32_0 : i32, i32
  }
  func.func @transform_4(%arg0: i32) -> (i32, i32) {
    %c0_i32 = arith.constant 0 : i32
    %c0_i32_0 = arith.constant 0 : i32
    %c0_i32_1 = arith.constant 0 : i32
    return %c0_i32, %c0_i32_0 : i32, i32
  }
  func.func @transform_5(%arg0: i32) -> (i32, i32) {
    %c0_i32 = arith.constant 0 : i32
    %c0_i32_0 = arith.constant 0 : i32
    %c0_i32_1 = arith.constant 0 : i32
    return %c0_i32, %c0_i32_0 : i32, i32
  }
  func.func @transform_6(%arg0: i32) -> (i32, i32) {
    %c0_i32 = arith.constant 0 : i32
    %c0_i32_0 = arith.constant 0 : i32
    %c0_i32_1 = arith.constant 0 : i32
    return %c0_i32, %c0_i32_0 : i32, i32
  }
  func.func @transform_7(%arg0: i32) -> (i32, i32) {
    %c0_i32 = arith.constant 0 : i32
    %c0_i32_0 = arith.constant 0 : i32
    %c0_i32_1 = arith.constant 0 : i32
    return %c0_i32, %c0_i32_0 : i32, i32
  }
  func.func @transform_8(%arg0: i32) -> (i32, i32) {
    %c0_i32 = arith.constant 0 : i32
    %c0_i32_0 = arith.constant 0 : i32
    %c0_i32_1 = arith.constant 0 : i32
    return %c0_i32, %c0_i32_0 : i32, i32
  }
  func.func @transform_9(%arg0: i32) -> (i32, i32) {
    %c0_i32 = arith.constant 0 : i32
    %c0_i32_0 = arith.constant 0 : i32
    %c0_i32_1 = arith.constant 0 : i32
    return %c0_i32, %c0_i32_0 : i32, i32
  }
  func.func @transform_10(%arg0: i32) -> (i32, i32) {
    %c0_i32 = arith.constant 0 : i32
    %c0_i32_0 = arith.constant 0 : i32
    %c0_i32_1 = arith.constant 0 : i32
    return %c0_i32, %c0_i32_0 : i32, i32
  }
  func.func @transform_11(%arg0: i32) -> (i32, i32) {
    %c0_i32 = arith.constant 0 : i32
    %c0_i32_0 = arith.constant 0 : i32
    %c0_i32_1 = arith.constant 0 : i32
    return %c0_i32, %c0_i32_0 : i32, i32
  }
  func.func @transform_12(%arg0: i32) -> (i32, i32) {
    %c0_i32 = arith.constant 0 : i32
    %c0_i32_0 = arith.constant 0 : i32
    %c0_i32_1 = arith.constant 0 : i32
    return %c0_i32, %c0_i32_0 : i32, i32
  }
  func.func @transform_13(%arg0: i32) -> (i32, i32) {
    %c0_i32 = arith.constant 0 : i32
    %c0_i32_0 = arith.constant 0 : i32
    %c0_i32_1 = arith.constant 0 : i32
    return %c0_i32, %c0_i32_0 : i32, i32
  }
  func.func @transform_14(%arg0: i32) -> (i32, i32) {
    %c0_i32 = arith.constant 0 : i32
    %c0_i32_0 = arith.constant 0 : i32
    %c0_i32_1 = arith.constant 0 : i32
    return %c0_i32, %c0_i32_0 : i32, i32
  }
  func.func @transform_15(%arg0: i32) -> (i32, i32) {
    %c0_i32 = arith.constant 0 : i32
    %c0_i32_0 = arith.constant 0 : i32
    %c0_i32_1 = arith.constant 0 : i32
    return %c0_i32, %c0_i32_0 : i32, i32
  }
  func.func @transform_16(%arg0: i32) -> (i32, i32, i32) {
    %c0_i32 = arith.constant 0 : i32
    %c0_i32_0 = arith.constant 0 : i32
    %c0_i32_1 = arith.constant 0 : i32
    return %arg0, %c0_i32, %c0_i32_0 : i32, i32, i32
  }
}

</mosaic_0001>

<llo_original>
// kernel: up_forward.1
$region0: #{up_forward.1}
  #allocation0 [shape = 'u32[]', space=smem, size = 0x4, offset = 0x4, fixed_abs, tag = 'smem constant byte address 0x4 - core index']
  #allocation1 [shape = 'u32[72,128]{1,0:T(1,128)}', space=vmem, size = 0x9000, scoped, tag = 'internal scratch']
  %s0 = inlined_call_operand.vmem [shape: f32[2,8,256], index: 0, kind: input, shape index: {}]
  %s1 = inlined_call_operand.vmem [shape: f32[2,8,64], index: 1, kind: input, shape index: {}]
  %s2 = inlined_call_operand.vmem [shape: f32[2,8,1], index: 2, kind: input, shape index: {}]
  %s3 = inlined_call_operand.vmem [shape: f32[64,256], index: 3, kind: input, shape index: {}]
  %s4 = inlined_call_operand.vmem [shape: f32[8,144], index: 4, kind: input, shape index: {}]
  %s5 = inlined_call_operand.vmem [shape: f32[8,1], index: 5, kind: input, shape index: {}]
  %s6 = inlined_call_operand.vmem [shape: f32[8,1], index: 6, kind: input, shape index: {}]
  %s7 = inlined_call_operand.vmem [shape: f32[8,72], index: 7, kind: input, shape index: {}]
  %s8 = inlined_call_operand.vmem [shape: f32[8,1], index: 8, kind: input, shape index: {}]
  %s9 = inlined_call_operand.vmem [shape: f32[8,1], index: 9, kind: input, shape index: {}]
  %s10 = inlined_call_operand.vmem [shape: f32[8,72], index: 10, kind: input, shape index: {}]
  %s11 = inlined_call_operand.vmem [shape: f32[8,1], index: 11, kind: input, shape index: {}]
  %s12 = inlined_call_operand.vmem [shape: f32[8,1], index: 12, kind: input, shape index: {}]
  %s13 = inlined_call_operand.vmem [shape: f32[8,72], index: 13, kind: input, shape index: {}]
  %s14 = inlined_call_operand.vmem [shape: f32[8,1], index: 14, kind: input, shape index: {}]
  %s15 = inlined_call_operand.vmem [shape: f32[8,1], index: 15, kind: input, shape index: {}]
  %s16 = inlined_call_operand.vmem [shape: f32[2,8,256], index: 16, kind: output, shape index: {}]
  %s17 = sld [smem:[#allocation0]]
  $region97: #{up_forward.1} parent=0
    _
  %s19 = ssub.s32 1, %s17
  %s20 = scalar_select 0, %s19, %s17
  loop: start=0, step=1, limit=4
  $region2: #{up_forward.1} parent=0 // loop_pre_header
    _
  $region3: #{up_forward.1} parent=0 // loop_header
    %s22 = sphi 0, %s26
    %p23 = scmp.ge.s32.totalorder %s22, 4
    %s32 = sphi 0, %s34
    %s35 = sphi 0, %s32
    %s36 = sphi 0, %s35
    %s52 = sphi 0, %s36
    %s58 = sphi 0, %s60
    %s61 = sphi 0, %s58
    %s62 = sphi 0, %s61
    %s78 = sphi 0, %s62
    %s84 = sphi 0, %s86
    %s87 = sphi 0, %s84
    %s88 = sphi 0, %s87
    %s104 = sphi 0, %s88
    %s108 = sphi 0, %s108
    %s110 = sphi 0, %s108
    %s111 = sphi 0, %s110
    %s125 = sphi 0, %s111
    %s129 = sphi 0, %s129
    %s131 = sphi 0, %s129
    %s132 = sphi 0, %s131
    %s146 = sphi 0, %s132
    %s150 = sphi 0, %s150
    %s152 = sphi 0, %s150
    %s153 = sphi 0, %s152
    %s167 = sphi 0, %s153
    %s171 = sphi 0, %s171
    %s173 = sphi 0, %s171
    %s174 = sphi 0, %s173
    %s188 = sphi 0, %s174
    %s192 = sphi 0, %s192
    %s194 = sphi 0, %s192
    %s195 = sphi 0, %s194
    %s209 = sphi 0, %s195
    %s213 = sphi 0, %s213
    %s215 = sphi 0, %s213
    %s216 = sphi 0, %s215
    %s230 = sphi 0, %s216
    %s234 = sphi 0, %s234
    %s236 = sphi 0, %s234
    %s237 = sphi 0, %s236
    %s251 = sphi 0, %s237
    %s255 = sphi 0, %s255
    %s257 = sphi 0, %s255
    %s258 = sphi 0, %s257
    %s272 = sphi 0, %s258
    %s276 = sphi 0, %s276
    %s278 = sphi 0, %s276
    %s279 = sphi 0, %s278
    %s293 = sphi 0, %s279
    %s297 = sphi 0, %s297
    %s299 = sphi 0, %s297
    %s300 = sphi 0, %s299
    %s314 = sphi 0, %s300
    %s318 = sphi 0, %s318
    %s320 = sphi 0, %s318
    %s321 = sphi 0, %s320
    %s335 = sphi 0, %s321
    %s339 = sphi 0, %s339
    %s341 = sphi 0, %s339
    %s342 = sphi 0, %s341
    %s356 = sphi 0, %s342
    %s360 = sphi 0, %s360
    %s362 = sphi 0, %s360
    %s363 = sphi 0, %s362
    %s377 = sphi 0, %s363
    %s383 = sphi 0, %s385
    %s386 = sphi 0, %s383
    %s387 = sphi 0, %s386
    %s403 = sphi 0, %s387
  $region4: #{up_forward.1} parent=0 // loop_header_branch
    %25 = sbr.rel (%p23) target = $region8
  $region5: #{up_forward.1} parent=0 // loop_body
    %s27 = ssub.s32 %s22, 1
    %s28 = ssub.s32 %s22, 2
    %s29 = sadd.s32 %s22, 1
    %s30 = ssub.s32 %s22, %s29
    %p31 = scmp.eq.s32.totalorder %s30, 0
    %s33 = sadd.s32 %s32, 1
    %s34 = scalar_select %p31, %s32, %s33
    %p37 = pneg %p31
    %p38 = scmp.eq.s32.totalorder %s22, 1
    %p39 = por %p37, %p38
    %p40 = scmp.ne.s32.totalorder %s32, %s35
    %p41 = scmp.eq.s32.totalorder %s22, 0
    %p42 = por %p40, %p41
    %p43 = scmp.ne.s32.totalorder %s32, %s35
    %p44 = scmp.eq.s32.totalorder %s27, 1
    %p45 = por %p43, %p44
    %p46 = scmp.ne.s32.totalorder %s35, %s36
    %p47 = scmp.eq.s32.totalorder %s27, 0
    %p48 = por %p46, %p47
    %p49 = scmp.ne.s32.totalorder %s35, %s36
    %p50 = scmp.eq.s32.totalorder %s28, 1
    %p51 = por %p49, %p50
    %p53 = scmp.ne.s32.totalorder %s36, %s52
    %p54 = scmp.eq.s32.totalorder %s28, 0
    %p55 = por %p53, %p54
    %s56 = ssub.s32 %s22, %s29
    %p57 = scmp.eq.s32.totalorder %s56, 0
    %s59 = sadd.s32 %s58, 1
    %s60 = scalar_select %p57, %s58, %s59
    %p63 = pneg %p57
    %p64 = scmp.eq.s32.totalorder %s22, 1
    %p65 = por %p63, %p64
    %p66 = scmp.ne.s32.totalorder %s58, %s61
    %p67 = scmp.eq.s32.totalorder %s22, 0
    %p68 = por %p66, %p67
    %p69 = scmp.ne.s32.totalorder %s58, %s61
    %p70 = scmp.eq.s32.totalorder %s27, 1
    %p71 = por %p69, %p70
    %p72 = scmp.ne.s32.totalorder %s61, %s62
    %p73 = scmp.eq.s32.totalorder %s27, 0
    %p74 = por %p72, %p73
    %p75 = scmp.ne.s32.totalorder %s61, %s62
    %p76 = scmp.eq.s32.totalorder %s28, 1
    %p77 = por %p75, %p76
    %p79 = scmp.ne.s32.totalorder %s62, %s78
    %p80 = scmp.eq.s32.totalorder %s28, 0
    %p81 = por %p79, %p80
    %s82 = ssub.s32 %s22, %s29
    %p83 = scmp.eq.s32.totalorder %s82, 0
    %s85 = sadd.s32 %s84, 1
    %s86 = scalar_select %p83, %s84, %s85
    %p89 = pneg %p83
    %p90 = scmp.eq.s32.totalorder %s22, 1
    %p91 = por %p89, %p90
    %p92 = scmp.ne.s32.totalorder %s84, %s87
    %p93 = scmp.eq.s32.totalorder %s22, 0
    %p94 = por %p92, %p93
    %p95 = scmp.ne.s32.totalorder %s84, %s87
    %p96 = scmp.eq.s32.totalorder %s27, 1
    %p97 = por %p95, %p96
    %p98 = scmp.ne.s32.totalorder %s87, %s88
    %p99 = scmp.eq.s32.totalorder %s27, 0
    %p100 = por %p98, %p99
    %p101 = scmp.ne.s32.totalorder %s87, %s88
    %p102 = scmp.eq.s32.totalorder %s28, 1
    %p103 = por %p101, %p102
    %p105 = scmp.ne.s32.totalorder %s88, %s104
    %p106 = scmp.eq.s32.totalorder %s28, 0
    %p107 = por %p105, %p106
    %s109 = sadd.s32 %s108, 1
    %p112 = scmp.eq.s32.totalorder %s22, 1
    %p113 = scmp.ne.s32.totalorder %s108, %s110
    %p114 = scmp.eq.s32.totalorder %s22, 0
    %p115 = por %p113, %p114
    %p116 = scmp.ne.s32.totalorder %s108, %s110
    %p117 = scmp.eq.s32.totalorder %s27, 1
    %p118 = por %p116, %p117
    %p119 = scmp.ne.s32.totalorder %s110, %s111
    %p120 = scmp.eq.s32.totalorder %s27, 0
    %p121 = por %p119, %p120
    %p122 = scmp.ne.s32.totalorder %s110, %s111
    %p123 = scmp.eq.s32.totalorder %s28, 1
    %p124 = por %p122, %p123
    %p126 = scmp.ne.s32.totalorder %s111, %s125
    %p127 = scmp.eq.s32.totalorder %s28, 0
    %p128 = por %p126, %p127
    %s130 = sadd.s32 %s129, 1
    %p133 = scmp.eq.s32.totalorder %s22, 1
    %p134 = scmp.ne.s32.totalorder %s129, %s131
    %p135 = scmp.eq.s32.totalorder %s22, 0
    %p136 = por %p134, %p135
    %p137 = scmp.ne.s32.totalorder %s129, %s131
    %p138 = scmp.eq.s32.totalorder %s27, 1
    %p139 = por %p137, %p138
    %p140 = scmp.ne.s32.totalorder %s131, %s132
    %p141 = scmp.eq.s32.totalorder %s27, 0
    %p142 = por %p140, %p141
    %p143 = scmp.ne.s32.totalorder %s131, %s132
    %p144 = scmp.eq.s32.totalorder %s28, 1
    %p145 = por %p143, %p144
    %p147 = scmp.ne.s32.totalorder %s132, %s146
    %p148 = scmp.eq.s32.totalorder %s28, 0
    %p149 = por %p147, %p148
    %s151 = sadd.s32 %s150, 1
    %p154 = scmp.eq.s32.totalorder %s22, 1
    %p155 = scmp.ne.s32.totalorder %s150, %s152
    %p156 = scmp.eq.s32.totalorder %s22, 0
    %p157 = por %p155, %p156
    %p158 = scmp.ne.s32.totalorder %s150, %s152
    %p159 = scmp.eq.s32.totalorder %s27, 1
    %p160 = por %p158, %p159
    %p161 = scmp.ne.s32.totalorder %s152, %s153
    %p162 = scmp.eq.s32.totalorder %s27, 0
    %p163 = por %p161, %p162
    %p164 = scmp.ne.s32.totalorder %s152, %s153
    %p165 = scmp.eq.s32.totalorder %s28, 1
    %p166 = por %p164, %p165
    %p168 = scmp.ne.s32.totalorder %s153, %s167
    %p169 = scmp.eq.s32.totalorder %s28, 0
    %p170 = por %p168, %p169
    %s172 = sadd.s32 %s171, 1
    %p175 = scmp.eq.s32.totalorder %s22, 1
    %p176 = scmp.ne.s32.totalorder %s171, %s173
    %p177 = scmp.eq.s32.totalorder %s22, 0
    %p178 = por %p176, %p177
    %p179 = scmp.ne.s32.totalorder %s171, %s173
    %p180 = scmp.eq.s32.totalorder %s27, 1
    %p181 = por %p179, %p180
    %p182 = scmp.ne.s32.totalorder %s173, %s174
    %p183 = scmp.eq.s32.totalorder %s27, 0
    %p184 = por %p182, %p183
    %p185 = scmp.ne.s32.totalorder %s173, %s174
    %p186 = scmp.eq.s32.totalorder %s28, 1
    %p187 = por %p185, %p186
    %p189 = scmp.ne.s32.totalorder %s174, %s188
    %p190 = scmp.eq.s32.totalorder %s28, 0
    %p191 = por %p189, %p190
    %s193 = sadd.s32 %s192, 1
    %p196 = scmp.eq.s32.totalorder %s22, 1
    %p197 = scmp.ne.s32.totalorder %s192, %s194
    %p198 = scmp.eq.s32.totalorder %s22, 0
    %p199 = por %p197, %p198
    %p200 = scmp.ne.s32.totalorder %s192, %s194
    %p201 = scmp.eq.s32.totalorder %s27, 1
    %p202 = por %p200, %p201
    %p203 = scmp.ne.s32.totalorder %s194, %s195
    %p204 = scmp.eq.s32.totalorder %s27, 0
    %p205 = por %p203, %p204
    %p206 = scmp.ne.s32.totalorder %s194, %s195
    %p207 = scmp.eq.s32.totalorder %s28, 1
    %p208 = por %p206, %p207
    %p210 = scmp.ne.s32.totalorder %s195, %s209
    %p211 = scmp.eq.s32.totalorder %s28, 0
    %p212 = por %p210, %p211
    %s214 = sadd.s32 %s213, 1
    %p217 = scmp.eq.s32.totalorder %s22, 1
    %p218 = scmp.ne.s32.totalorder %s213, %s215
    %p219 = scmp.eq.s32.totalorder %s22, 0
    %p220 = por %p218, %p219
    %p221 = scmp.ne.s32.totalorder %s213, %s215
    %p222 = scmp.eq.s32.totalorder %s27, 1
    %p223 = por %p221, %p222
    %p224 = scmp.ne.s32.totalorder %s215, %s216
    %p225 = scmp.eq.s32.totalorder %s27, 0
    %p226 = por %p224, %p225
    %p227 = scmp.ne.s32.totalorder %s215, %s216
    %p228 = scmp.eq.s32.totalorder %s28, 1
    %p229 = por %p227, %p228
    %p231 = scmp.ne.s32.totalorder %s216, %s230
    %p232 = scmp.eq.s32.totalorder %s28, 0
    %p233 = por %p231, %p232
    %s235 = sadd.s32 %s234, 1
    %p238 = scmp.eq.s32.totalorder %s22, 1
    %p239 = scmp.ne.s32.totalorder %s234, %s236
    %p240 = scmp.eq.s32.totalorder %s22, 0
    %p241 = por %p239, %p240
    %p242 = scmp.ne.s32.totalorder %s234, %s236
    %p243 = scmp.eq.s32.totalorder %s27, 1
    %p244 = por %p242, %p243
    %p245 = scmp.ne.s32.totalorder %s236, %s237
    %p246 = scmp.eq.s32.totalorder %s27, 0
    %p247 = por %p245, %p246
    %p248 = scmp.ne.s32.totalorder %s236, %s237
    %p249 = scmp.eq.s32.totalorder %s28, 1
    %p250 = por %p248, %p249
    %p252 = scmp.ne.s32.totalorder %s237, %s251
    %p253 = scmp.eq.s32.totalorder %s28, 0
    %p254 = por %p252, %p253
    %s256 = sadd.s32 %s255, 1
    %p259 = scmp.eq.s32.totalorder %s22, 1
    %p260 = scmp.ne.s32.totalorder %s255, %s257
    %p261 = scmp.eq.s32.totalorder %s22, 0
    %p262 = por %p260, %p261
    %p263 = scmp.ne.s32.totalorder %s255, %s257
    %p264 = scmp.eq.s32.totalorder %s27, 1
    %p265 = por %p263, %p264
    %p266 = scmp.ne.s32.totalorder %s257, %s258
    %p267 = scmp.eq.s32.totalorder %s27, 0
    %p268 = por %p266, %p267
    %p269 = scmp.ne.s32.totalorder %s257, %s258
    %p270 = scmp.eq.s32.totalorder %s28, 1
    %p271 = por %p269, %p270
    %p273 = scmp.ne.s32.totalorder %s258, %s272
    %p274 = scmp.eq.s32.totalorder %s28, 0
    %p275 = por %p273, %p274
    %s277 = sadd.s32 %s276, 1
    %p280 = scmp.eq.s32.totalorder %s22, 1
    %p281 = scmp.ne.s32.totalorder %s276, %s278
    %p282 = scmp.eq.s32.totalorder %s22, 0
    %p283 = por %p281, %p282
    %p284 = scmp.ne.s32.totalorder %s276, %s278
    %p285 = scmp.eq.s32.totalorder %s27, 1
    %p286 = por %p284, %p285
    %p287 = scmp.ne.s32.totalorder %s278, %s279
    %p288 = scmp.eq.s32.totalorder %s27, 0
    %p289 = por %p287, %p288
    %p290 = scmp.ne.s32.totalorder %s278, %s279
    %p291 = scmp.eq.s32.totalorder %s28, 1
    %p292 = por %p290, %p291
    %p294 = scmp.ne.s32.totalorder %s279, %s293
    %p295 = scmp.eq.s32.totalorder %s28, 0
    %p296 = por %p294, %p295
    %s298 = sadd.s32 %s297, 1
    %p301 = scmp.eq.s32.totalorder %s22, 1
    %p302 = scmp.ne.s32.totalorder %s297, %s299
    %p303 = scmp.eq.s32.totalorder %s22, 0
    %p304 = por %p302, %p303
    %p305 = scmp.ne.s32.totalorder %s297, %s299
    %p306 = scmp.eq.s32.totalorder %s27, 1
    %p307 = por %p305, %p306
    %p308 = scmp.ne.s32.totalorder %s299, %s300
    %p309 = scmp.eq.s32.totalorder %s27, 0
    %p310 = por %p308, %p309
    %p311 = scmp.ne.s32.totalorder %s299, %s300
    %p312 = scmp.eq.s32.totalorder %s28, 1
    %p313 = por %p311, %p312
    %p315 = scmp.ne.s32.totalorder %s300, %s314
    %p316 = scmp.eq.s32.totalorder %s28, 0
    %p317 = por %p315, %p316
    %s319 = sadd.s32 %s318, 1
    %p322 = scmp.eq.s32.totalorder %s22, 1
    %p323 = scmp.ne.s32.totalorder %s318, %s320
    %p324 = scmp.eq.s32.totalorder %s22, 0
    %p325 = por %p323, %p324
    %p326 = scmp.ne.s32.totalorder %s318, %s320
    %p327 = scmp.eq.s32.totalorder %s27, 1
    %p328 = por %p326, %p327
    %p329 = scmp.ne.s32.totalorder %s320, %s321
    %p330 = scmp.eq.s32.totalorder %s27, 0
    %p331 = por %p329, %p330
    %p332 = scmp.ne.s32.totalorder %s320, %s321
    %p333 = scmp.eq.s32.totalorder %s28, 1
    %p334 = por %p332, %p333
    %p336 = scmp.ne.s32.totalorder %s321, %s335
    %p337 = scmp.eq.s32.totalorder %s28, 0
    %p338 = por %p336, %p337
    %s340 = sadd.s32 %s339, 1
    %p343 = scmp.eq.s32.totalorder %s22, 1
    %p344 = scmp.ne.s32.totalorder %s339, %s341
    %p345 = scmp.eq.s32.totalorder %s22, 0
    %p346 = por %p344, %p345
    %p347 = scmp.ne.s32.totalorder %s339, %s341
    %p348 = scmp.eq.s32.totalorder %s27, 1
    %p349 = por %p347, %p348
    %p350 = scmp.ne.s32.totalorder %s341, %s342
    %p351 = scmp.eq.s32.totalorder %s27, 0
    %p352 = por %p350, %p351
    %p353 = scmp.ne.s32.totalorder %s341, %s342
    %p354 = scmp.eq.s32.totalorder %s28, 1
    %p355 = por %p353, %p354
    %p357 = scmp.ne.s32.totalorder %s342, %s356
    %p358 = scmp.eq.s32.totalorder %s28, 0
    %p359 = por %p357, %p358
    %s361 = sadd.s32 %s360, 1
    %p364 = scmp.eq.s32.totalorder %s22, 1
    %p365 = scmp.ne.s32.totalorder %s360, %s362
    %p366 = scmp.eq.s32.totalorder %s22, 0
    %p367 = por %p365, %p366
    %p368 = scmp.ne.s32.totalorder %s360, %s362
    %p369 = scmp.eq.s32.totalorder %s27, 1
    %p370 = por %p368, %p369
    %p371 = scmp.ne.s32.totalorder %s362, %s363
    %p372 = scmp.eq.s32.totalorder %s27, 0
    %p373 = por %p371, %p372
    %p374 = scmp.ne.s32.totalorder %s362, %s363
    %p375 = scmp.eq.s32.totalorder %s28, 1
    %p376 = por %p374, %p375
    %p378 = scmp.ne.s32.totalorder %s363, %s377
    %p379 = scmp.eq.s32.totalorder %s28, 0
    %p380 = por %p378, %p379
    %s381 = ssub.s32 %s22, %s29
    %p382 = scmp.eq.s32.totalorder %s381, 0
    %s384 = sadd.s32 %s383, 1
    %s385 = scalar_select %p382, %s383, %s384
    %p388 = pneg %p382
    %p389 = scmp.eq.s32.totalorder %s22, 1
    %p390 = por %p388, %p389
    %p391 = scmp.ne.s32.totalorder %s383, %s386
    %p392 = scmp.eq.s32.totalorder %s22, 0
    %p393 = por %p391, %p392
    %p394 = scmp.ne.s32.totalorder %s383, %s386
    %p395 = scmp.eq.s32.totalorder %s27, 1
    %p396 = por %p394, %p395
    %p397 = scmp.ne.s32.totalorder %s386, %s387
    %p398 = scmp.eq.s32.totalorder %s27, 0
    %p399 = por %p397, %p398
    %p400 = scmp.ne.s32.totalorder %s386, %s387
    %p401 = scmp.eq.s32.totalorder %s28, 1
    %p402 = por %p400, %p401
    %p404 = scmp.ne.s32.totalorder %s387, %s403
    %p405 = scmp.eq.s32.totalorder %s28, 0
    %p406 = por %p404, %p405
    %p407 = scmp.le.s32.totalorder 1, %s22
    %p408 = scmp.lt.s32.totalorder %s22, 3
    %p409 = pnand %p407, %p408
    %p410 = pneg %p409
    // Predicated region
    $region9: #{up_forward.1} parent=5 // pred_check
      _
    $region10: #{up_forward.1} parent=5 // pred_check_branch
      %412 = sbr.rel (%p409) target = $region12
    $region11: #{up_forward.1} parent=5 // pred_region
      %s413 = ssub.s32 %s22, 1
      // Predicated region
      $region13: #{up_forward.1} parent=11 // pred_check
        %p414 = pneg %p121
      $region14: #{up_forward.1} parent=11 // pred_check_branch
        %416 = sbr.rel (%p414) target = $region16
      $region15: #{up_forward.1} parent=11 // pred_region
        _
      $region16: #{up_forward.1} parent=11 // pred_fallthru
        _
      // Predicated region
      $region17: #{up_forward.1} parent=11 // pred_check
        %p417 = pneg %p142
      $region18: #{up_forward.1} parent=11 // pred_check_branch
        %419 = sbr.rel (%p417) target = $region20
      $region19: #{up_forward.1} parent=11 // pred_region
        _
      $region20: #{up_forward.1} parent=11 // pred_fallthru
        _
      // Predicated region
      $region21: #{up_forward.1} parent=11 // pred_check
        %p420 = pneg %p163
      $region22: #{up_forward.1} parent=11 // pred_check_branch
        %422 = sbr.rel (%p420) target = $region24
      $region23: #{up_forward.1} parent=11 // pred_region
        _
      $region24: #{up_forward.1} parent=11 // pred_fallthru
        _
      // Predicated region
      $region25: #{up_forward.1} parent=11 // pred_check
        %p423 = pneg %p184
      $region26: #{up_forward.1} parent=11 // pred_check_branch
        %425 = sbr.rel (%p423) target = $region28
      $region27: #{up_forward.1} parent=11 // pred_region
        _
      $region28: #{up_forward.1} parent=11 // pred_fallthru
        _
      // Predicated region
      $region29: #{up_forward.1} parent=11 // pred_check
        %p426 = pneg %p205
      $region30: #{up_forward.1} parent=11 // pred_check_branch
        %428 = sbr.rel (%p426) target = $region32
      $region31: #{up_forward.1} parent=11 // pred_region
        _
      $region32: #{up_forward.1} parent=11 // pred_fallthru
        _
      // Predicated region
      $region33: #{up_forward.1} parent=11 // pred_check
        %p429 = pneg %p226
      $region34: #{up_forward.1} parent=11 // pred_check_branch
        %431 = sbr.rel (%p429) target = $region36
      $region35: #{up_forward.1} parent=11 // pred_region
        _
      $region36: #{up_forward.1} parent=11 // pred_fallthru
        _
      // Predicated region
      $region37: #{up_forward.1} parent=11 // pred_check
        %p432 = pneg %p247
      $region38: #{up_forward.1} parent=11 // pred_check_branch
        %434 = sbr.rel (%p432) target = $region40
      $region39: #{up_forward.1} parent=11 // pred_region
        _
      $region40: #{up_forward.1} parent=11 // pred_fallthru
        _
      // Predicated region
      $region41: #{up_forward.1} parent=11 // pred_check
        %p435 = pneg %p268
      $region42: #{up_forward.1} parent=11 // pred_check_branch
        %437 = sbr.rel (%p435) target = $region44
      $region43: #{up_forward.1} parent=11 // pred_region
        _
      $region44: #{up_forward.1} parent=11 // pred_fallthru
        _
      // Predicated region
      $region45: #{up_forward.1} parent=11 // pred_check
        %p438 = pneg %p289
      $region46: #{up_forward.1} parent=11 // pred_check_branch
        %440 = sbr.rel (%p438) target = $region48
      $region47: #{up_forward.1} parent=11 // pred_region
        _
      $region48: #{up_forward.1} parent=11 // pred_fallthru
        _
      // Predicated region
      $region49: #{up_forward.1} parent=11 // pred_check
        %p441 = pneg %p310
      $region50: #{up_forward.1} parent=11 // pred_check_branch
        %443 = sbr.rel (%p441) target = $region52
      $region51: #{up_forward.1} parent=11 // pred_region
        _
      $region52: #{up_forward.1} parent=11 // pred_fallthru
        _
      // Predicated region
      $region53: #{up_forward.1} parent=11 // pred_check
        %p444 = pneg %p331
      $region54: #{up_forward.1} parent=11 // pred_check_branch
        %446 = sbr.rel (%p444) target = $region56
      $region55: #{up_forward.1} parent=11 // pred_region
        _
      $region56: #{up_forward.1} parent=11 // pred_fallthru
        _
      // Predicated region
      $region57: #{up_forward.1} parent=11 // pred_check
        %p447 = pneg %p352
      $region58: #{up_forward.1} parent=11 // pred_check_branch
        %449 = sbr.rel (%p447) target = $region60
      $region59: #{up_forward.1} parent=11 // pred_region
        _
      $region60: #{up_forward.1} parent=11 // pred_fallthru
        _
      // Predicated region
      $region61: #{up_forward.1} parent=11 // pred_check
        %p450 = pneg %p373
      $region62: #{up_forward.1} parent=11 // pred_check_branch
        %452 = sbr.rel (%p450) target = $region64
      $region63: #{up_forward.1} parent=11 // pred_region
        _
      $region64: #{up_forward.1} parent=11 // pred_fallthru
        _
    $region12: #{up_forward.1} parent=5 // pred_fallthru
      _
    %p453 = scmp.lt.s32.totalorder %s22, 2
    // Predicated region
    $region65: #{up_forward.1} parent=5 // pred_check
      %p454 = pneg %p453
    $region66: #{up_forward.1} parent=5 // pred_check_branch
      %456 = sbr.rel (%p454) target = $region68
    $region67: #{up_forward.1} parent=5 // pred_region
      // Predicated region
      $region69: #{up_forward.1} parent=67 // pred_check
        %p457 = pneg %p42
      $region70: #{up_forward.1} parent=67 // pred_check_branch
        %459 = sbr.rel (%p457) target = $region72
      $region71: #{up_forward.1} parent=67 // pred_region
        %p460 = scmp.lt.s32.totalorder %s22, 1
        %s461 = scalar_select %p460, %s22, 1
        %s462 = smul.addr %s461, 2
        %s463 = smul.addr %s462, 8
        %s464 = scalar_lea.vmem %s0, %s463
      $region72: #{up_forward.1} parent=67 // pred_fallthru
        _
      // Predicated region
      $region73: #{up_forward.1} parent=67 // pred_check
        %p465 = pneg %p68
      $region74: #{up_forward.1} parent=67 // pred_check_branch
        %467 = sbr.rel (%p465) target = $region76
      $region75: #{up_forward.1} parent=67 // pred_region
        %p468 = scmp.lt.s32.totalorder %s22, 1
        %s469 = scalar_select %p468, %s22, 1
        %s470 = smul.addr %s469, 8
        %s471 = scalar_lea.vmem %s1, %s470
      $region76: #{up_forward.1} parent=67 // pred_fallthru
        _
      // Predicated region
      $region77: #{up_forward.1} parent=67 // pred_check
        %p472 = pneg %p94
      $region78: #{up_forward.1} parent=67 // pred_check_branch
        %474 = sbr.rel (%p472) target = $region80
      $region79: #{up_forward.1} parent=67 // pred_region
        %p475 = scmp.lt.s32.totalorder %s22, 1
        %s476 = scalar_select %p475, %s22, 1
        %s477 = smul.addr %s476, 8
        %s478 = scalar_lea.vmem %s2, %s477
      $region80: #{up_forward.1} parent=67 // pred_fallthru
        _
    $region68: #{up_forward.1} parent=5 // pred_fallthru
      _
    %p479 = scmp.le.s32.totalorder 1, %s22
    %p480 = scmp.lt.s32.totalorder %s22, 3
    %p481 = pnand %p479, %p480
    %p482 = pneg %p481
    // Predicated region
    $region81: #{up_forward.1} parent=5 // pred_check
      _
    $region82: #{up_forward.1} parent=5 // pred_check_branch
      %484 = sbr.rel (%p481) target = $region84
    $region83: #{up_forward.1} parent=5 // pred_region
      %s485 = ssub.s32 %s22, 1
      %p486 = scmp.lt.s32.totalorder %s27, 1
      %s487 = scalar_select %p486, %s27, 1
      %s488 = smul.addr %s487, 2
      %s489 = smul.addr %s488, 8
      %s490 = scalar_lea.vmem %s0, %s489
      %p491 = pneg %p48
      %p492 = pneg %p45
      %p493 = scmp.lt.s32.totalorder %s27, 1
      %s494 = scalar_select %p493, %s27, 1
      %s495 = smul.addr %s494, 8
      %s496 = scalar_lea.vmem %s1, %s495
      %p497 = pneg %p74
      %p498 = pneg %p71
      %p499 = scmp.lt.s32.totalorder %s27, 1
      %s500 = scalar_select %p499, %s27, 1
      %s501 = smul.addr %s500, 8
      %s502 = scalar_lea.vmem %s2, %s501
      %p503 = pneg %p100
      %p504 = pneg %p97
      %p505 = pneg %p121
      %p506 = pneg %p118
      %p507 = pneg %p142
      %p508 = pneg %p139
      %p509 = pneg %p163
      %p510 = pneg %p160
      %p511 = pneg %p184
      %p512 = pneg %p181
      %p513 = pneg %p205
      %p514 = pneg %p202
      %p515 = pneg %p226
      %p516 = pneg %p223
      %p517 = pneg %p247
      %p518 = pneg %p244
      %p519 = pneg %p268
      %p520 = pneg %p265
      %p521 = pneg %p289
      %p522 = pneg %p286
      %p523 = pneg %p310
      %p524 = pneg %p307
      %p525 = pneg %p331
      %p526 = pneg %p328
      %p527 = pneg %p352
      %p528 = pneg %p349
      %p529 = pneg %p373
      %p530 = pneg %p370
      %p531 = pneg %p399
      %p532 = pneg %p396
      %p533 = scmp.lt.s32.totalorder %s27, 1
      %s534 = scalar_select %p533, %s27, 1
      %s535 = smul.addr %s534, 2
      %s536 = smul.addr %s535, 8
      %s537 = scalar_lea.vmem %s16, %s536
      %p538 = scmp.lt.s32.totalorder %s27, 1
      %s539 = scalar_select %p538, %s27, 1
      %s540 = smul.addr %s539, 2
      %s541 = smul.addr %s540, 8
      %s542 = scalar_lea.vmem %s0, %s541
      %p543 = scmp.lt.s32.totalorder %s27, 1
      %s544 = scalar_select %p543, %s27, 1
      %s545 = smul.addr %s544, 8
      %s546 = scalar_lea.vmem %s1, %s545
      %p547 = scmp.lt.s32.totalorder %s27, 1
      %s548 = scalar_select %p547, %s27, 1
      %s549 = smul.addr %s548, 8
      %s550 = scalar_lea.vmem %s2, %s549
      %p551 = scmp.lt.s32.totalorder %s27, 1
      %s552 = scalar_select %p551, %s27, 1
      %s553 = smul.addr %s552, 2
      %s554 = smul.addr %s553, 8
      %s555 = scalar_lea.vmem %s16, %s554
      %v556 = vlaneseq
      %v557 = vand.u32 %v556, 127
      %v558 = vadd.s32 %v557, 128
      %vm559 = vcmp.lt.s32.totalorder %v557, 0
      %v560 = vsub.s32 0, %v557
      %v561 = vsel %vm559, %v560, %v557
      %v562 = vshrl.u32 %v561, 4
      %v563 = vand.u32 %v561, 15
      %v564 = vsub.s32 0, %v563
      %v565 = vsel %vm559, %v564, %v563
      %vm566 = vcmp.lt.s32.totalorder %v558, 0
      %v567 = vsub.s32 0, %v558
      %v568 = vsel %vm566, %v567, %v558
      %v569 = vshrl.u32 %v568, 4
      %v570 = vand.u32 %v568, 15
      %v571 = vsub.s32 0, %v570
      %v572 = vsel %vm566, %v571, %v570
      %vm573 = vcmp.ne.s32.totalorder %v565, 0
      %vm574 = vcmp.ne.s32.totalorder %v572, 0
      %vm575 = vcmp.lt.s32.totalorder %v565, 0
      %vm576 = vcmp.lt.s32.totalorder %v572, 0
      %vm577 = vmand %vm575, %vm573
      %vm578 = vmand %vm576, %vm574
      %v579 = vadd.s32 %v565, 16
      %v580 = vadd.s32 %v572, 16
      %v581 = vsel %vm577, %v579, %v565
      %v582 = vsel %vm578, %v580, %v572
      %vm583 = vcmp.ge.s32.totalorder %v581, 1
      %vm584 = vcmp.ge.s32.totalorder %v582, 1
      %vm585 = vcmp.le.s32.totalorder %v581, 14
      %vm586 = vcmp.le.s32.totalorder %v582, 14
      %v587 = vld [vmem:[%s546] sm:$0xff]
      %v588 = vld [vmem:[%s3] sm:$0xff]
      %v589 = vld [vmem:[%s3 + $0x8] sm:$0xff]
      %v590 = vld [vmem:[%s3 + $0x10] sm:$0xff]
      %v591 = vld [vmem:[%s3 + $0x18] sm:$0xff]
      %v592 = vld [vmem:[%s3 + $0x20] sm:$0xff]
      %v593 = vld [vmem:[%s3 + $0x28] sm:$0xff]
      %v594 = vld [vmem:[%s3 + $0x30] sm:$0xff]
      %v595 = vld [vmem:[%s3 + $0x38] sm:$0xff]
      %v596 = vld [vmem:[%s3 + $0x40] sm:$0xff]
      %v597 = vld [vmem:[%s3 + $0x48] sm:$0xff]
      %v598 = vld [vmem:[%s3 + $0x50] sm:$0xff]
      %v599 = vld [vmem:[%s3 + $0x58] sm:$0xff]
      %v600 = vld [vmem:[%s3 + $0x60] sm:$0xff]
      %v601 = vld [vmem:[%s3 + $0x68] sm:$0xff]
      %v602 = vld [vmem:[%s3 + $0x70] sm:$0xff]
      %v603 = vld [vmem:[%s3 + $0x78] sm:$0xff]
      %vm604 = vcmask 523264
      %v606 = vsel %vm604, %v587, 0
      %608 = vmatpush.msra.mxu0 0.0
      %609 = vmatpush.msra.mxu0 0.0
      %610 = vmatpush.msra.mxu0 0.0
      %611 = vmatpush.msra.mxu0 0.0
      %612 = vmatpush.msra.mxu0 0.0
      %613 = vmatpush.msra.mxu0 0.0
      %614 = vmatpush.msra.mxu0 0.0
      %615 = vmatpush.msra.mxu0 0.0
      %616 = vmatpush.msra.mxu0 %v602
      %617 = vmatpush.msra.mxu0 %v600
      %618 = vmatpush.msra.mxu0 %v598
      %619 = vmatpush.msra.mxu0 %v596
      %620 = vmatpush.msra.mxu0 %v594
      %621 = vmatpush.msra.mxu0 %v592
      %622 = vmatpush.msra.mxu0 %v590
      %623 = vmatpush.msra.mxu0 %v588
      %624 = vmatmul.f32.gmra.mxu0 %v606
      %v625 = vpop.f32.mrf.mxu0
      %v626 = vadd.f32 0.0, %v625
      %627 = vdwg.mxu0
      %628 = vmatpush.msra.mxu0 0.0
      %629 = vmatpush.msra.mxu0 0.0
      %630 = vmatpush.msra.mxu0 0.0
      %631 = vmatpush.msra.mxu0 0.0
      %632 = vmatpush.msra.mxu0 0.0
      %633 = vmatpush.msra.mxu0 0.0
      %634 = vmatpush.msra.mxu0 0.0
      %635 = vmatpush.msra.mxu0 0.0
      %636 = vmatpush.msra.mxu0 %v603
      %637 = vmatpush.msra.mxu0 %v601
      %638 = vmatpush.msra.mxu0 %v599
      %639 = vmatpush.msra.mxu0 %v597
      %640 = vmatpush.msra.mxu0 %v595
      %641 = vmatpush.msra.mxu0 %v593
      %642 = vmatpush.msra.mxu0 %v591
      %643 = vmatpush.msra.mxu0 %v589
      %644 = vmatmul.f32.gmra.mxu0 %v606
      %v645 = vpop.f32.mrf.mxu0
      %v646 = vadd.f32 0.0, %v645
      %647 = vdwg.mxu0
      %v648 = vld [vmem:[%s542] sm:$0xff]
      %v649 = vld [vmem:[%s542 + $0x8] sm:$0xff]
      %v650 = vsel %vm583, 1, 0
      %v651 = vsel %vm584, 1, 0
      %vm652 = vcmp.eq.s32.totalorder %v650, 1
      %vm653 = vcmp.eq.s32.totalorder %v651, 1
      %659 = vrot.lane.b32.xlu0 0.0, 17
      %v660 = vpop.permute.xlu0 %659
      %661 = vrot.lane.b32.xlu0 %v648, 17
      %v662 = vpop.permute.xlu0 %661
      %663 = vrot.lane.b32.xlu0 %v649, 17
      %v664 = vpop.permute.xlu0 %663
      %665 = vrot.lane.b32.xlu0 %v626, 17
      %v666 = vpop.permute.xlu0 %665
      %667 = vrot.lane.b32.xlu0 %v646, 17
      %v668 = vpop.permute.xlu0 %667
      %vm669 = vcmask 138240
      %v670 = vsel %vm669, %v660, %v662
      %v671 = vsel %vm669, %v662, %v664
      %v672 = vsel %vm669, %v660, %v666
      %v673 = vsel %vm669, %v666, %v668
      %v678 = vsel %vm652, %v670, 0.0
      %v679 = vsel %vm653, %v671, 0.0
      %v680 = vsel %vm652, %v672, 0.0
      %v681 = vsel %vm653, %v673, 0.0
      %v682 = vsel %vm585, 1, 0
      %v683 = vsel %vm586, 1, 0
      %vm684 = vcmp.eq.s32.totalorder %v682, 1
      %vm685 = vcmp.eq.s32.totalorder %v683, 1
      %686 = vrot.lane.b32.xlu0 0.0, 15
      %v687 = vpop.permute.xlu0 %686
      %688 = vrot.lane.b32.xlu0 %v648, 15
      %v689 = vpop.permute.xlu0 %688
      %690 = vrot.lane.b32.xlu0 %v649, 15
      %v691 = vpop.permute.xlu0 %690
      %692 = vrot.lane.b32.xlu0 %v626, 15
      %v693 = vpop.permute.xlu0 %692
      %694 = vrot.lane.b32.xlu0 %v646, 15
      %v695 = vpop.permute.xlu0 %694
      %vm696 = vcmask 121856
      %v697 = vsel %vm696, %v687, %v689
      %v698 = vsel %vm696, %v689, %v691
      %v699 = vsel %vm696, %v687, %v693
      %v700 = vsel %vm696, %v693, %v695
      %v705 = vsel %vm684, %v697, 0.0
      %v706 = vsel %vm685, %v698, 0.0
      %v707 = vsel %vm684, %v699, 0.0
      %v708 = vsel %vm685, %v700, 0.0
      %709 = vrot.lane.b32.xlu0 0.0, 1
      %v710 = vpop.permute.xlu0 %709
      %711 = vrot.lane.b32.xlu0 %v648, 1
      %v712 = vpop.permute.xlu0 %711
      %713 = vrot.lane.b32.xlu0 %v649, 1
      %v714 = vpop.permute.xlu0 %713
      %715 = vrot.lane.b32.xlu0 %v626, 1
      %v716 = vpop.permute.xlu0 %715
      %717 = vrot.lane.b32.xlu0 %v646, 1
      %v718 = vpop.permute.xlu0 %717
      %vm719 = vcmask 7168
      %v720 = vsel %vm719, %v710, %v712
      %v721 = vsel %vm719, %v712, %v714
      %v722 = vsel %vm719, %v710, %v716
      %v723 = vsel %vm719, %v716, %v718
      %v728 = vsel %vm652, %v720, 0.0
      %v729 = vsel %vm653, %v721, 0.0
      %v730 = vsel %vm652, %v722, 0.0
      %v731 = vsel %vm653, %v723, 0.0
      %732 = vrot.lane.b32.xlu0 %v648, 127
      %v733 = vpop.permute.xlu0 %732
      %734 = vrot.lane.b32.xlu0 %v649, 127
      %v735 = vpop.permute.xlu0 %734
      %736 = vrot.lane.b32.xlu0 0.0, 127
      %v737 = vpop.permute.xlu0 %736
      %738 = vrot.lane.b32.xlu0 %v626, 127
      %v739 = vpop.permute.xlu0 %738
      %740 = vrot.lane.b32.xlu0 %v646, 127
      %v741 = vpop.permute.xlu0 %740
      %vm742 = vcmask 1039360
      %v743 = vsel %vm742, %v733, %v735
      %v744 = vsel %vm742, %v735, %v737
      %v745 = vsel %vm742, %v739, %v741
      %v746 = vsel %vm742, %v741, %v737
      %v751 = vsel %vm684, %v743, 0.0
      %v752 = vsel %vm685, %v744, 0.0
      %v753 = vsel %vm684, %v745, 0.0
      %v754 = vsel %vm685, %v746, 0.0
      %755 = vrot.lane.b32.xlu0 %v648, 113
      %v756 = vpop.permute.xlu0 %755
      %757 = vrot.lane.b32.xlu0 %v649, 113
      %v758 = vpop.permute.xlu0 %757
      %759 = vrot.lane.b32.xlu0 0.0, 113
      %v760 = vpop.permute.xlu0 %759
      %761 = vrot.lane.b32.xlu0 %v626, 113
      %v762 = vpop.permute.xlu0 %761
      %763 = vrot.lane.b32.xlu0 %v646, 113
      %v764 = vpop.permute.xlu0 %763
      %vm765 = vcmask 924672
      %v766 = vsel %vm765, %v756, %v758
      %v767 = vsel %vm765, %v758, %v760
      %v768 = vsel %vm765, %v762, %v764
      %v769 = vsel %vm765, %v764, %v760
      %v774 = vsel %vm652, %v766, 0.0
      %v775 = vsel %vm653, %v767, 0.0
      %v776 = vsel %vm652, %v768, 0.0
      %v777 = vsel %vm653, %v769, 0.0
      %778 = vrot.lane.b32.xlu0 %v648, 111
      %v779 = vpop.permute.xlu0 %778
      %780 = vrot.lane.b32.xlu0 %v649, 111
      %v781 = vpop.permute.xlu0 %780
      %782 = vrot.lane.b32.xlu0 0.0, 111
      %v783 = vpop.permute.xlu0 %782
      %784 = vrot.lane.b32.xlu0 %v626, 111
      %v785 = vpop.permute.xlu0 %784
      %786 = vrot.lane.b32.xlu0 %v646, 111
      %v787 = vpop.permute.xlu0 %786
      %vm788 = vcmask 908288
      %v789 = vsel %vm788, %v779, %v781
      %v790 = vsel %vm788, %v781, %v783
      %v791 = vsel %vm788, %v785, %v787
      %v792 = vsel %vm788, %v787, %v783
      %v797 = vsel %vm684, %v789, 0.0
      %v798 = vsel %vm685, %v790, 0.0
      %v799 = vsel %vm684, %v791, 0.0
      %v800 = vsel %vm685, %v792, 0.0
      %801 = vrot.lane.b32.xlu0 0.0, 16
      %v802 = vpop.permute.xlu0 %801
      %803 = vrot.lane.b32.xlu0 %v648, 16
      %v804 = vpop.permute.xlu0 %803
      %805 = vrot.lane.b32.xlu0 %v649, 16
      %v806 = vpop.permute.xlu0 %805
      %807 = vrot.lane.b32.xlu0 %v626, 16
      %v808 = vpop.permute.xlu0 %807
      %809 = vrot.lane.b32.xlu0 %v646, 16
      %v810 = vpop.permute.xlu0 %809
      %vm811 = vcmask 130048
      %v812 = vsel %vm811, %v802, %v804
      %v813 = vsel %vm811, %v804, %v806
      %v814 = vsel %vm811, %v802, %v808
      %v815 = vsel %vm811, %v808, %v810
      %820 = vrot.lane.b32.xlu0 %v648, 112
      %v821 = vpop.permute.xlu0 %820
      %822 = vrot.lane.b32.xlu0 %v649, 112
      %v823 = vpop.permute.xlu0 %822
      %824 = vrot.lane.b32.xlu0 0.0, 112
      %v825 = vpop.permute.xlu0 %824
      %826 = vrot.lane.b32.xlu0 %v626, 112
      %v827 = vpop.permute.xlu0 %826
      %828 = vrot.lane.b32.xlu0 %v646, 112
      %v829 = vpop.permute.xlu0 %828
      %vm830 = vcmask 916480
      %v831 = vsel %vm830, %v821, %v823
      %v832 = vsel %vm830, %v823, %v825
      %v833 = vsel %vm830, %v827, %v829
      %v834 = vsel %vm830, %v829, %v825
      %v839 = vld [vmem:[%s4] sm:$0xff]
      %v840 = vld [vmem:[%s4 + $0x8] sm:$0xff]
      %v842 = vsel %vm811, %v840, 0
      %844 = vmatpush.msra.mxu0 %v833
      %845 = vmatpush.msra.mxu0 %v831
      %846 = vmatpush.msra.mxu0 %v776
      %847 = vmatpush.msra.mxu0 %v774
      %848 = vmatpush.msra.mxu0 %v753
      %849 = vmatpush.msra.mxu0 %v751
      %850 = vmatpush.msra.mxu0 %v626
      %851 = vmatpush.msra.mxu0 %v648
      %852 = vmatpush.msra.mxu0 %v730
      %853 = vmatpush.msra.mxu0 %v728
      %854 = vmatpush.msra.mxu0 %v707
      %855 = vmatpush.msra.mxu0 %v705
      %856 = vmatpush.msra.mxu0 %v814
      %857 = vmatpush.msra.mxu0 %v812
      %858 = vmatpush.msra.mxu0 %v680
      %859 = vmatpush.msra.mxu0 %v678
      %860 = vmatmul.f32.gmra.mxu0 %v839
      %v861 = vpop.f32.mrf.mxu0
      %v862 = vadd.f32 0.0, %v861
      %863 = vdwg.mxu0
      %864 = vmatpush.msra.mxu0 0.0
      %865 = vmatpush.msra.mxu0 0.0
      %866 = vmatpush.msra.mxu0 0.0
      %867 = vmatpush.msra.mxu0 0.0
      %868 = vmatpush.msra.mxu0 0.0
      %869 = vmatpush.msra.mxu0 0.0
      %870 = vmatpush.msra.mxu0 0.0
      %871 = vmatpush.msra.mxu0 0.0
      %872 = vmatpush.msra.mxu0 0.0
      %873 = vmatpush.msra.mxu0 0.0
      %874 = vmatpush.msra.mxu0 0.0
      %875 = vmatpush.msra.mxu0 0.0
      %876 = vmatpush.msra.mxu0 0.0
      %877 = vmatpush.msra.mxu0 0.0
      %878 = vmatpush.msra.mxu0 %v799
      %879 = vmatpush.msra.mxu0 %v797
      %880 = vmatmul.f32.gmra.mxu0 %v842
      %v881 = vpop.f32.mrf.mxu0
      %v882 = vadd.f32 %v862, %v881
      %883 = vdwg.mxu0
      %884 = vmatpush.msra.mxu0 %v834
      %885 = vmatpush.msra.mxu0 %v832
      %886 = vmatpush.msra.mxu0 %v777
      %887 = vmatpush.msra.mxu0 %v775
      %888 = vmatpush.msra.mxu0 %v754
      %889 = vmatpush.msra.mxu0 %v752
      %890 = vmatpush.msra.mxu0 %v646
      %891 = vmatpush.msra.mxu0 %v649
      %892 = vmatpush.msra.mxu0 %v731
      %893 = vmatpush.msra.mxu0 %v729
      %894 = vmatpush.msra.mxu0 %v708
      %895 = vmatpush.msra.mxu0 %v706
      %896 = vmatpush.msra.mxu0 %v815
      %897 = vmatpush.msra.mxu0 %v813
      %898 = vmatpush.msra.mxu0 %v681
      %899 = vmatpush.msra.mxu0 %v679
      %900 = vmatmul.f32.gmra.mxu0 %v839
      %v901 = vpop.f32.mrf.mxu0
      %v902 = vadd.f32 0.0, %v901
      %903 = vdwg.mxu0
      %904 = vmatpush.msra.mxu0 0.0
      %905 = vmatpush.msra.mxu0 0.0
      %906 = vmatpush.msra.mxu0 0.0
      %907 = vmatpush.msra.mxu0 0.0
      %908 = vmatpush.msra.mxu0 0.0
      %909 = vmatpush.msra.mxu0 0.0
      %910 = vmatpush.msra.mxu0 0.0
      %911 = vmatpush.msra.mxu0 0.0
      %912 = vmatpush.msra.mxu0 0.0
      %913 = vmatpush.msra.mxu0 0.0
      %914 = vmatpush.msra.mxu0 0.0
      %915 = vmatpush.msra.mxu0 0.0
      %916 = vmatpush.msra.mxu0 0.0
      %917 = vmatpush.msra.mxu0 0.0
      %918 = vmatpush.msra.mxu0 %v800
      %919 = vmatpush.msra.mxu0 %v798
      %920 = vmatmul.f32.gmra.mxu0 %v842
      %v921 = vpop.f32.mrf.mxu0
      %v922 = vadd.f32 %v902, %v921
      %923 = vdwg.mxu0
      %v924 = vadd.f32 %v882, %v922
      %925 = vadd.xlane.f32.xlu0 %v924
      %v926 = vpop.xlane.xlu0 %925
      %v927 = vrot.slane %v926, 4
      %v928 = vadd.f32 %v926, %v927
      %v929 = vrot.slane %v928, 2
      %v930 = vadd.f32 %v928, %v929
      %v931 = vrot.slane %v930, 1
      %v932 = vadd.f32 %v930, %v931
      %s933 = vtos %v932
      %v934 = vstv %s933
      %v935 = vmul.f32 %v882, %v882
      %v936 = vmul.f32 %v922, %v922
      %v937 = vadd.f32 %v935, %v936
      %938 = vadd.xlane.f32.xlu0 %v937
      %v939 = vpop.xlane.xlu0 %938
      %v940 = vrot.slane %v939, 4
      %v941 = vadd.f32 %v939, %v940
      %v942 = vrot.slane %v941, 2
      %v943 = vadd.f32 %v941, %v942
      %v944 = vrot.slane %v943, 1
      %v945 = vadd.f32 %v943, %v944
      %s946 = vtos %v945
      %v947 = vstv %s946
      %v948 = vrcp.pop 2048.0
      %v949 = vmul.f32 2048.0, %v948
      %v950 = vsub.f32 1.0, %v949
      %v951 = vmul.f32 %v948, %v950
      %v952 = vadd.f32 %v948, %v951
      %vm953 = vweird.f32 %v948
      %v954 = vsel %vm953, %v948, %v952
      %v955 = vmul.f32 %v934, %v954
      %v956 = vmul.f32 %v947, %v954
      %v957 = vmul.f32 %v955, %v955
      %v958 = vsub.f32 %v956, %v957
      %v959 = vmax.f32 %v958, 0.0
      %v960 = vsub.f32 %v882, %v955
      %v961 = vsub.f32 %v922, %v955
      %v962 = vadd.f32 %v959, 1e-05
      %v963 = vrsqrt.pop %v962
      %v964 = vmul.f32 %v963, %v962
      %v965 = vmul.f32 %v964, %v963
      %v966 = vmul.f32 0.5, %v965
      %v967 = vsub.f32 1.5, %v966
      %v968 = vmul.f32 %v963, %v967
      %vm969 = vweird.f32 %v962
      %vm970 = vweird.f32 %v963
      %vm971 = vmor %vm969, %vm970
      %v972 = vsel %vm971, %v963, %v968
      %v973 = vmul.f32 %v960, %v972
      %v974 = vmul.f32 %v961, %v972
      %v975 = vld [vmem:[%s5] sm:$0xff]
      %977 = vset.pattern.permute.xlu0 0
      %978 = vperm.xlu0 %977, %v975
      %v979 = vpop.permute.xlu0 %978
      %v981 = vmul.f32 %v973, %v979
      %v982 = vmul.f32 %v974, %v979
      %v983 = vld [vmem:[%s6] sm:$0xff]
      %985 = vset.pattern.permute.xlu0 0
      %986 = vperm.xlu0 %985, %v983
      %v987 = vpop.permute.xlu0 %986
      %v989 = vadd.f32 %v981, %v987
      %v990 = vadd.f32 %v982, %v987
      %v991 = vmul.f32 %v989, 0.70710677
      %v992 = vmul.f32 %v990, 0.70710677
      %v993 = vand.u32 2147483647, %v991
      %v994 = vand.u32 2147483647, %v992
      %v995 = vmul.f32 %v993, 0.3275911
      %v996 = vmul.f32 %v994, 0.3275911
      %v997 = vadd.f32 %v995, 1.0
      %v998 = vadd.f32 %v996, 1.0
      %v999 = vrcp.pop %v997
      %v1000 = vmul.f32 %v997, %v999
      %v1001 = vsub.f32 1.0, %v1000
      %v1002 = vmul.f32 %v999, %v1001
      %v1003 = vadd.f32 %v999, %v1002
      %vm1004 = vweird.f32 %v997
      %vm1005 = vweird.f32 %v999
      %vm1006 = vmor %vm1004, %vm1005
      %v1007 = vsel %vm1006, %v999, %v1003
      %v1008 = vand.u32 2147483647, %v997
      %vm1009 = vcmp.eq.f32.partialorder %v1008, 8.507059e+37
      %v1010 = vand.u32 %v997, 2147483648
      %v1011 = vor.u32 1.1754944e-38, %v1010
      %v1012 = vsel %vm1009, %v1011, %v1007
      %v1013 = vmul.f32 1.0, %v1012
      %v1014 = vrcp.pop %v998
      %v1015 = vmul.f32 %v998, %v1014
      %v1016 = vsub.f32 1.0, %v1015
      %v1017 = vmul.f32 %v1014, %v1016
      %v1018 = vadd.f32 %v1014, %v1017
      %vm1019 = vweird.f32 %v998
      %vm1020 = vweird.f32 %v1014
      %vm1021 = vmor %vm1019, %vm1020
      %v1022 = vsel %vm1021, %v1014, %v1018
      %v1023 = vand.u32 2147483647, %v998
      %vm1024 = vcmp.eq.f32.partialorder %v1023, 8.507059e+37
      %v1025 = vand.u32 %v998, 2147483648
      %v1026 = vor.u32 1.1754944e-38, %v1025
      %v1027 = vsel %vm1024, %v1026, %v1022
      %v1028 = vmul.f32 1.0, %v1027
      %v1029 = vmul.f32 %v1013, 1.0614054
      %v1030 = vmul.f32 %v1028, 1.0614054
      %v1031 = vsub.f32 %v1029, 1.4531521
      %v1032 = vsub.f32 %v1030, 1.4531521
      %v1033 = vmul.f32 %v1031, %v1013
      %v1034 = vmul.f32 %v1032, %v1028
      %v1035 = vadd.f32 %v1033, 1.4214138
      %v1036 = vadd.f32 %v1034, 1.4214138
      %v1037 = vmul.f32 %v1035, %v1013
      %v1038 = vmul.f32 %v1036, %v1028
      %v1039 = vsub.f32 %v1037, 0.28449672
      %v1040 = vsub.f32 %v1038, 0.28449672
      %v1041 = vmul.f32 %v1039, %v1013
      %v1042 = vmul.f32 %v1040, %v1028
      %v1043 = vadd.f32 %v1041, 0.2548296
      %v1044 = vadd.f32 %v1042, 0.2548296
      %v1045 = vmul.f32 %v1043, %v1013
      %v1046 = vmul.f32 %v1044, %v1028
      %v1047 = vsub.f32 0.0, %v993
      %v1048 = vsub.f32 0.0, %v994
      %v1049 = vmul.f32 %v1047, %v993
      %v1050 = vmul.f32 %v1048, %v994
      %v1051 = vmul.f32 %v1049, 1.442695
      %v1052 = vpow.pop %v1051
      %v1053 = vmul.f32 %v1050, 1.442695
      %v1054 = vpow.pop %v1053
      %v1055 = vmul.f32 %v1045, %v1052
      %v1056 = vmul.f32 %v1046, %v1054
      %v1057 = vsub.f32 1.0, %v1055
      %v1058 = vsub.f32 1.0, %v1056
      %vm1059 = vcmp.lt.f32.partialorder %v991, 0.0
      %vm1060 = vcmp.lt.f32.partialorder %v992, 0.0
      %v1061 = vsub.f32 0.0, %v1057
      %v1062 = vsub.f32 0.0, %v1058
      %v1063 = vsel %vm1059, %v1061, %v1057
      %v1064 = vsel %vm1060, %v1062, %v1058
      %v1065 = vmul.f32 %v989, 0.5
      %v1066 = vmul.f32 %v990, 0.5
      %v1067 = vadd.f32 %v1063, 1.0
      %v1068 = vadd.f32 %v1064, 1.0
      %v1069 = vmul.f32 %v1065, %v1067
      %v1070 = vmul.f32 %v1066, %v1068
      %1073 = vrot.lane.b32.xlu0 %v1069, 17
      %v1074 = vpop.permute.xlu0 %1073
      %1075 = vrot.lane.b32.xlu0 %v1070, 17
      %v1076 = vpop.permute.xlu0 %1075
      %v1077 = vsel %vm669, %v660, %v1074
      %v1078 = vsel %vm669, %v1074, %v1076
      %v1081 = vsel %vm652, %v1077, 0.0
      %v1082 = vsel %vm653, %v1078, 0.0
      %1083 = vrot.lane.b32.xlu0 %v1069, 15
      %v1084 = vpop.permute.xlu0 %1083
      %1085 = vrot.lane.b32.xlu0 %v1070, 15
      %v1086 = vpop.permute.xlu0 %1085
      %v1087 = vsel %vm696, %v687, %v1084
      %v1088 = vsel %vm696, %v1084, %v1086
      %v1091 = vsel %vm684, %v1087, 0.0
      %v1092 = vsel %vm685, %v1088, 0.0
      %1093 = vrot.lane.b32.xlu0 %v1069, 1
      %v1094 = vpop.permute.xlu0 %1093
      %1095 = vrot.lane.b32.xlu0 %v1070, 1
      %v1096 = vpop.permute.xlu0 %1095
      %v1097 = vsel %vm719, %v710, %v1094
      %v1098 = vsel %vm719, %v1094, %v1096
      %v1101 = vsel %vm652, %v1097, 0.0
      %v1102 = vsel %vm653, %v1098, 0.0
      %1103 = vrot.lane.b32.xlu0 %v1069, 127
      %v1104 = vpop.permute.xlu0 %1103
      %1105 = vrot.lane.b32.xlu0 %v1070, 127
      %v1106 = vpop.permute.xlu0 %1105
      %v1107 = vsel %vm742, %v1104, %v1106
      %v1108 = vsel %vm742, %v1106, %v737
      %v1111 = vsel %vm684, %v1107, 0.0
      %v1112 = vsel %vm685, %v1108, 0.0
      %1113 = vrot.lane.b32.xlu0 %v1069, 113
      %v1114 = vpop.permute.xlu0 %1113
      %1115 = vrot.lane.b32.xlu0 %v1070, 113
      %v1116 = vpop.permute.xlu0 %1115
      %v1117 = vsel %vm765, %v1114, %v1116
      %v1118 = vsel %vm765, %v1116, %v760
      %v1121 = vsel %vm652, %v1117, 0.0
      %v1122 = vsel %vm653, %v1118, 0.0
      %1123 = vrot.lane.b32.xlu0 %v1069, 111
      %v1124 = vpop.permute.xlu0 %1123
      %1125 = vrot.lane.b32.xlu0 %v1070, 111
      %v1126 = vpop.permute.xlu0 %1125
      %v1127 = vsel %vm788, %v1124, %v1126
      %v1128 = vsel %vm788, %v1126, %v783
      %v1131 = vsel %vm684, %v1127, 0.0
      %v1132 = vsel %vm685, %v1128, 0.0
      %1133 = vrot.lane.b32.xlu0 %v1069, 16
      %v1134 = vpop.permute.xlu0 %1133
      %1135 = vrot.lane.b32.xlu0 %v1070, 16
      %v1136 = vpop.permute.xlu0 %1135
      %v1137 = vsel %vm811, %v802, %v1134
      %v1138 = vsel %vm811, %v1134, %v1136
      %1141 = vrot.lane.b32.xlu0 %v1069, 112
      %v1142 = vpop.permute.xlu0 %1141
      %1143 = vrot.lane.b32.xlu0 %v1070, 112
      %v1144 = vpop.permute.xlu0 %1143
      %v1145 = vsel %vm830, %v1142, %v1144
      %v1146 = vsel %vm830, %v1144, %v825
      %v1149 = vld [vmem:[%s7] sm:$0xff]
      %vm1150 = vcmask 588800
      %v1152 = vsel %vm1150, %v1149, 0
      %1154 = vmatpush.msra.mxu0 0.0
      %1155 = vmatpush.msra.mxu0 0.0
      %1156 = vmatpush.msra.mxu0 0.0
      %1157 = vmatpush.msra.mxu0 0.0
      %1158 = vmatpush.msra.mxu0 0.0
      %1159 = vmatpush.msra.mxu0 0.0
      %1160 = vmatpush.msra.mxu0 0.0
      %1161 = vmatpush.msra.mxu0 %v1131
      %1162 = vmatpush.msra.mxu0 %v1145
      %1163 = vmatpush.msra.mxu0 %v1121
      %1164 = vmatpush.msra.mxu0 %v1111
      %1165 = vmatpush.msra.mxu0 %v1069
      %1166 = vmatpush.msra.mxu0 %v1101
      %1167 = vmatpush.msra.mxu0 %v1091
      %1168 = vmatpush.msra.mxu0 %v1137
      %1169 = vmatpush.msra.mxu0 %v1081
      %1170 = vmatmul.f32.gmra.mxu0 %v1152
      %v1171 = vpop.f32.mrf.mxu0
      %v1172 = vadd.f32 0.0, %v1171
      %1173 = vdwg.mxu0
      %1174 = vmatpush.msra.mxu0 0.0
      %1175 = vmatpush.msra.mxu0 0.0
      %1176 = vmatpush.msra.mxu0 0.0
      %1177 = vmatpush.msra.mxu0 0.0
      %1178 = vmatpush.msra.mxu0 0.0
      %1179 = vmatpush.msra.mxu0 0.0
      %1180 = vmatpush.msra.mxu0 0.0
      %1181 = vmatpush.msra.mxu0 %v1132
      %1182 = vmatpush.msra.mxu0 %v1146
      %1183 = vmatpush.msra.mxu0 %v1122
      %1184 = vmatpush.msra.mxu0 %v1112
      %1185 = vmatpush.msra.mxu0 %v1070
      %1186 = vmatpush.msra.mxu0 %v1102
      %1187 = vmatpush.msra.mxu0 %v1092
      %1188 = vmatpush.msra.mxu0 %v1138
      %1189 = vmatpush.msra.mxu0 %v1082
      %1190 = vmatmul.f32.gmra.mxu0 %v1152
      %v1191 = vpop.f32.mrf.mxu0
      %v1192 = vadd.f32 0.0, %v1191
      %1193 = vdwg.mxu0
      %v1194 = vadd.f32 %v1172, %v1192
      %1195 = vadd.xlane.f32.xlu0 %v1194
      %v1196 = vpop.xlane.xlu0 %1195
      %v1197 = vrot.slane %v1196, 4
      %v1198 = vadd.f32 %v1196, %v1197
      %v1199 = vrot.slane %v1198, 2
      %v1200 = vadd.f32 %v1198, %v1199
      %v1201 = vrot.slane %v1200, 1
      %v1202 = vadd.f32 %v1200, %v1201
      %s1203 = vtos %v1202
      %v1204 = vstv %s1203
      %v1205 = vmul.f32 %v1172, %v1172
      %v1206 = vmul.f32 %v1192, %v1192
      %v1207 = vadd.f32 %v1205, %v1206
      %1208 = vadd.xlane.f32.xlu0 %v1207
      %v1209 = vpop.xlane.xlu0 %1208
      %v1210 = vrot.slane %v1209, 4
      %v1211 = vadd.f32 %v1209, %v1210
      %v1212 = vrot.slane %v1211, 2
      %v1213 = vadd.f32 %v1211, %v1212
      %v1214 = vrot.slane %v1213, 1
      %v1215 = vadd.f32 %v1213, %v1214
      %s1216 = vtos %v1215
      %v1217 = vstv %s1216
      %v1218 = vmul.f32 %v1204, %v954
      %v1219 = vmul.f32 %v1217, %v954
      %v1220 = vmul.f32 %v1218, %v1218
      %v1221 = vsub.f32 %v1219, %v1220
      %v1222 = vmax.f32 %v1221, 0.0
      %v1223 = vsub.f32 %v1172, %v1218
      %v1224 = vsub.f32 %v1192, %v1218
      %v1225 = vadd.f32 %v1222, 1e-05
      %v1226 = vrsqrt.pop %v1225
      %v1227 = vmul.f32 %v1226, %v1225
      %v1228 = vmul.f32 %v1227, %v1226
      %v1229 = vmul.f32 0.5, %v1228
      %v1230 = vsub.f32 1.5, %v1229
      %v1231 = vmul.f32 %v1226, %v1230
      %vm1232 = vweird.f32 %v1225
      %vm1233 = vweird.f32 %v1226
      %vm1234 = vmor %vm1232, %vm1233
      %v1235 = vsel %vm1234, %v1226, %v1231
      %v1236 = vmul.f32 %v1223, %v1235
      %v1237 = vmul.f32 %v1224, %v1235
      %v1238 = vld [vmem:[%s8] sm:$0xff]
      %1240 = vset.pattern.permute.xlu0 0
      %1241 = vperm.xlu0 %1240, %v1238
      %v1242 = vpop.permute.xlu0 %1241
      %v1244 = vmul.f32 %v1236, %v1242
      %v1245 = vmul.f32 %v1237, %v1242
      %v1246 = vld [vmem:[%s9] sm:$0xff]
      %1248 = vset.pattern.permute.xlu0 0
      %1249 = vperm.xlu0 %1248, %v1246
      %v1250 = vpop.permute.xlu0 %1249
      %v1252 = vadd.f32 %v1244, %v1250
      %v1253 = vadd.f32 %v1245, %v1250
      %1256 = vrot.lane.b32.xlu0 %v1252, 17
      %v1257 = vpop.permute.xlu0 %1256
      %1258 = vrot.lane.b32.xlu0 %v1253, 17
      %v1259 = vpop.permute.xlu0 %1258
      %v1260 = vsel %vm669, %v660, %v1257
      %v1261 = vsel %vm669, %v1257, %v1259
      %v1264 = vsel %vm652, %v1260, 0.0
      %v1265 = vsel %vm653, %v1261, 0.0
      %1266 = vrot.lane.b32.xlu0 %v1252, 15
      %v1267 = vpop.permute.xlu0 %1266
      %1268 = vrot.lane.b32.xlu0 %v1253, 15
      %v1269 = vpop.permute.xlu0 %1268
      %v1270 = vsel %vm696, %v687, %v1267
      %v1271 = vsel %vm696, %v1267, %v1269
      %v1274 = vsel %vm684, %v1270, 0.0
      %v1275 = vsel %vm685, %v1271, 0.0
      %1276 = vrot.lane.b32.xlu0 %v1252, 1
      %v1277 = vpop.permute.xlu0 %1276
      %1278 = vrot.lane.b32.xlu0 %v1253, 1
      %v1279 = vpop.permute.xlu0 %1278
      %v1280 = vsel %vm719, %v710, %v1277
      %v1281 = vsel %vm719, %v1277, %v1279
      %v1284 = vsel %vm652, %v1280, 0.0
      %v1285 = vsel %vm653, %v1281, 0.0
      %1286 = vrot.lane.b32.xlu0 %v1252, 127
      %v1287 = vpop.permute.xlu0 %1286
      %1288 = vrot.lane.b32.xlu0 %v1253, 127
      %v1289 = vpop.permute.xlu0 %1288
      %v1290 = vsel %vm742, %v1287, %v1289
      %v1291 = vsel %vm742, %v1289, %v737
      %v1294 = vsel %vm684, %v1290, 0.0
      %v1295 = vsel %vm685, %v1291, 0.0
      %1296 = vrot.lane.b32.xlu0 %v1252, 113
      %v1297 = vpop.permute.xlu0 %1296
      %1298 = vrot.lane.b32.xlu0 %v1253, 113
      %v1299 = vpop.permute.xlu0 %1298
      %v1300 = vsel %vm765, %v1297, %v1299
      %v1301 = vsel %vm765, %v1299, %v760
      %v1304 = vsel %vm652, %v1300, 0.0
      %v1305 = vsel %vm653, %v1301, 0.0
      %1306 = vrot.lane.b32.xlu0 %v1252, 111
      %v1307 = vpop.permute.xlu0 %1306
      %1308 = vrot.lane.b32.xlu0 %v1253, 111
      %v1309 = vpop.permute.xlu0 %1308
      %v1310 = vsel %vm788, %v1307, %v1309
      %v1311 = vsel %vm788, %v1309, %v783
      %v1314 = vsel %vm684, %v1310, 0.0
      %v1315 = vsel %vm685, %v1311, 0.0
      %1316 = vrot.lane.b32.xlu0 %v1252, 16
      %v1317 = vpop.permute.xlu0 %1316
      %1318 = vrot.lane.b32.xlu0 %v1253, 16
      %v1319 = vpop.permute.xlu0 %1318
      %v1320 = vsel %vm811, %v802, %v1317
      %v1321 = vsel %vm811, %v1317, %v1319
      %1324 = vrot.lane.b32.xlu0 %v1252, 112
      %v1325 = vpop.permute.xlu0 %1324
      %1326 = vrot.lane.b32.xlu0 %v1253, 112
      %v1327 = vpop.permute.xlu0 %1326
      %v1328 = vsel %vm830, %v1325, %v1327
      %v1329 = vsel %vm830, %v1327, %v825
      %v1332 = vld [vmem:[%s10] sm:$0xff]
      %v1334 = vsel %vm1150, %v1332, 0
      %1336 = vmatpush.msra.mxu0 0.0
      %1337 = vmatpush.msra.mxu0 0.0
      %1338 = vmatpush.msra.mxu0 0.0
      %1339 = vmatpush.msra.mxu0 0.0
      %1340 = vmatpush.msra.mxu0 0.0
      %1341 = vmatpush.msra.mxu0 0.0
      %1342 = vmatpush.msra.mxu0 0.0
      %1343 = vmatpush.msra.mxu0 %v1314
      %1344 = vmatpush.msra.mxu0 %v1328
      %1345 = vmatpush.msra.mxu0 %v1304
      %1346 = vmatpush.msra.mxu0 %v1294
      %1347 = vmatpush.msra.mxu0 %v1252
      %1348 = vmatpush.msra.mxu0 %v1284
      %1349 = vmatpush.msra.mxu0 %v1274
      %1350 = vmatpush.msra.mxu0 %v1320
      %1351 = vmatpush.msra.mxu0 %v1264
      %1352 = vmatmul.f32.gmra.mxu0 %v1334
      %v1353 = vpop.f32.mrf.mxu0
      %v1354 = vadd.f32 0.0, %v1353
      %1355 = vdwg.mxu0
      %1356 = vmatpush.msra.mxu0 0.0
      %1357 = vmatpush.msra.mxu0 0.0
      %1358 = vmatpush.msra.mxu0 0.0
      %1359 = vmatpush.msra.mxu0 0.0
      %1360 = vmatpush.msra.mxu0 0.0
      %1361 = vmatpush.msra.mxu0 0.0
      %1362 = vmatpush.msra.mxu0 0.0
      %1363 = vmatpush.msra.mxu0 %v1315
      %1364 = vmatpush.msra.mxu0 %v1329
      %1365 = vmatpush.msra.mxu0 %v1305
      %1366 = vmatpush.msra.mxu0 %v1295
      %1367 = vmatpush.msra.mxu0 %v1253
      %1368 = vmatpush.msra.mxu0 %v1285
      %1369 = vmatpush.msra.mxu0 %v1275
      %1370 = vmatpush.msra.mxu0 %v1321
      %1371 = vmatpush.msra.mxu0 %v1265
      %1372 = vmatmul.f32.gmra.mxu0 %v1334
      %v1373 = vpop.f32.mrf.mxu0
      %v1374 = vadd.f32 0.0, %v1373
      %1375 = vdwg.mxu0
      %v1376 = vadd.f32 %v1354, %v1374
      %1377 = vadd.xlane.f32.xlu0 %v1376
      %v1378 = vpop.xlane.xlu0 %1377
      %v1379 = vrot.slane %v1378, 4
      %v1380 = vadd.f32 %v1378, %v1379
      %v1381 = vrot.slane %v1380, 2
      %v1382 = vadd.f32 %v1380, %v1381
      %v1383 = vrot.slane %v1382, 1
      %v1384 = vadd.f32 %v1382, %v1383
      %s1385 = vtos %v1384
      %v1386 = vstv %s1385
      %v1387 = vmul.f32 %v1354, %v1354
      %v1388 = vmul.f32 %v1374, %v1374
      %v1389 = vadd.f32 %v1387, %v1388
      %1390 = vadd.xlane.f32.xlu0 %v1389
      %v1391 = vpop.xlane.xlu0 %1390
      %v1392 = vrot.slane %v1391, 4
      %v1393 = vadd.f32 %v1391, %v1392
      %v1394 = vrot.slane %v1393, 2
      %v1395 = vadd.f32 %v1393, %v1394
      %v1396 = vrot.slane %v1395, 1
      %v1397 = vadd.f32 %v1395, %v1396
      %s1398 = vtos %v1397
      %v1399 = vstv %s1398
      %v1400 = vrcp.pop 1024.0
      %v1401 = vmul.f32 1024.0, %v1400
      %v1402 = vsub.f32 1.0, %v1401
      %v1403 = vmul.f32 %v1400, %v1402
      %v1404 = vadd.f32 %v1400, %v1403
      %vm1405 = vweird.f32 %v1400
      %v1406 = vsel %vm1405, %v1400, %v1404
      %v1407 = vmul.f32 %v1386, %v1406
      %v1408 = vmul.f32 %v1399, %v1406
      %v1409 = vmul.f32 %v1407, %v1407
      %v1410 = vsub.f32 %v1408, %v1409
      %v1411 = vmax.f32 %v1410, 0.0
      %v1412 = vsub.f32 %v1354, %v1407
      %v1413 = vsub.f32 %v1374, %v1407
      %v1414 = vadd.f32 %v1411, 1e-05
      %v1415 = vrsqrt.pop %v1414
      %v1416 = vmul.f32 %v1415, %v1414
      %v1417 = vmul.f32 %v1416, %v1415
      %v1418 = vmul.f32 0.5, %v1417
      %v1419 = vsub.f32 1.5, %v1418
      %v1420 = vmul.f32 %v1415, %v1419
      %vm1421 = vweird.f32 %v1414
      %vm1422 = vweird.f32 %v1415
      %vm1423 = vmor %vm1421, %vm1422
      %v1424 = vsel %vm1423, %v1415, %v1420
      %v1425 = vmul.f32 %v1412, %v1424
      %v1426 = vmul.f32 %v1413, %v1424
      %v1427 = vld [vmem:[%s11] sm:$0xff]
      %1429 = vset.pattern.permute.xlu0 0
      %1430 = vperm.xlu0 %1429, %v1427
      %v1431 = vpop.permute.xlu0 %1430
      %v1433 = vmul.f32 %v1425, %v1431
      %v1434 = vmul.f32 %v1426, %v1431
      %v1435 = vld [vmem:[%s12] sm:$0xff]
      %1437 = vset.pattern.permute.xlu0 0
      %1438 = vperm.xlu0 %1437, %v1435
      %v1439 = vpop.permute.xlu0 %1438
      %v1441 = vadd.f32 %v1433, %v1439
      %v1442 = vadd.f32 %v1434, %v1439
      %v1443 = vmul.f32 %v1441, 0.70710677
      %v1444 = vmul.f32 %v1442, 0.70710677
      %v1445 = vand.u32 2147483647, %v1443
      %v1446 = vand.u32 2147483647, %v1444
      %v1447 = vmul.f32 %v1445, 0.3275911
      %v1448 = vmul.f32 %v1446, 0.3275911
      %v1449 = vadd.f32 %v1447, 1.0
      %v1450 = vadd.f32 %v1448, 1.0
      %v1451 = vrcp.pop %v1449
      %v1452 = vmul.f32 %v1449, %v1451
      %v1453 = vsub.f32 1.0, %v1452
      %v1454 = vmul.f32 %v1451, %v1453
      %v1455 = vadd.f32 %v1451, %v1454
      %vm1456 = vweird.f32 %v1449
      %vm1457 = vweird.f32 %v1451
      %vm1458 = vmor %vm1456, %vm1457
      %v1459 = vsel %vm1458, %v1451, %v1455
      %v1460 = vand.u32 2147483647, %v1449
      %vm1461 = vcmp.eq.f32.partialorder %v1460, 8.507059e+37
      %v1462 = vand.u32 %v1449, 2147483648
      %v1463 = vor.u32 1.1754944e-38, %v1462
      %v1464 = vsel %vm1461, %v1463, %v1459
      %v1465 = vmul.f32 1.0, %v1464
      %v1466 = vrcp.pop %v1450
      %v1467 = vmul.f32 %v1450, %v1466
      %v1468 = vsub.f32 1.0, %v1467
      %v1469 = vmul.f32 %v1466, %v1468
      %v1470 = vadd.f32 %v1466, %v1469
      %vm1471 = vweird.f32 %v1450
      %vm1472 = vweird.f32 %v1466
      %vm1473 = vmor %vm1471, %vm1472
      %v1474 = vsel %vm1473, %v1466, %v1470
      %v1475 = vand.u32 2147483647, %v1450
      %vm1476 = vcmp.eq.f32.partialorder %v1475, 8.507059e+37
      %v1477 = vand.u32 %v1450, 2147483648
      %v1478 = vor.u32 1.1754944e-38, %v1477
      %v1479 = vsel %vm1476, %v1478, %v1474
      %v1480 = vmul.f32 1.0, %v1479
      %v1481 = vmul.f32 %v1465, 1.0614054
      %v1482 = vmul.f32 %v1480, 1.0614054
      %v1483 = vsub.f32 %v1481, 1.4531521
      %v1484 = vsub.f32 %v1482, 1.4531521
      %v1485 = vmul.f32 %v1483, %v1465
      %v1486 = vmul.f32 %v1484, %v1480
      %v1487 = vadd.f32 %v1485, 1.4214138
      %v1488 = vadd.f32 %v1486, 1.4214138
      %v1489 = vmul.f32 %v1487, %v1465
      %v1490 = vmul.f32 %v1488, %v1480
      %v1491 = vsub.f32 %v1489, 0.28449672
      %v1492 = vsub.f32 %v1490, 0.28449672
      %v1493 = vmul.f32 %v1491, %v1465
      %v1494 = vmul.f32 %v1492, %v1480
      %v1495 = vadd.f32 %v1493, 0.2548296
      %v1496 = vadd.f32 %v1494, 0.2548296
      %v1497 = vmul.f32 %v1495, %v1465
      %v1498 = vmul.f32 %v1496, %v1480
      %v1499 = vsub.f32 0.0, %v1445
      %v1500 = vsub.f32 0.0, %v1446
      %v1501 = vmul.f32 %v1499, %v1445
      %v1502 = vmul.f32 %v1500, %v1446
      %v1503 = vmul.f32 %v1501, 1.442695
      %v1504 = vpow.pop %v1503
      %v1505 = vmul.f32 %v1502, 1.442695
      %v1506 = vpow.pop %v1505
      %v1507 = vmul.f32 %v1497, %v1504
      %v1508 = vmul.f32 %v1498, %v1506
      %v1509 = vsub.f32 1.0, %v1507
      %v1510 = vsub.f32 1.0, %v1508
      %vm1511 = vcmp.lt.f32.partialorder %v1443, 0.0
      %vm1512 = vcmp.lt.f32.partialorder %v1444, 0.0
      %v1513 = vsub.f32 0.0, %v1509
      %v1514 = vsub.f32 0.0, %v1510
      %v1515 = vsel %vm1511, %v1513, %v1509
      %v1516 = vsel %vm1512, %v1514, %v1510
      %v1517 = vmul.f32 %v1441, 0.5
      %v1518 = vmul.f32 %v1442, 0.5
      %v1519 = vadd.f32 %v1515, 1.0
      %v1520 = vadd.f32 %v1516, 1.0
      %v1521 = vmul.f32 %v1517, %v1519
      %v1522 = vmul.f32 %v1518, %v1520
      %1525 = vrot.lane.b32.xlu0 %v1521, 17
      %v1526 = vpop.permute.xlu0 %1525
      %1527 = vrot.lane.b32.xlu0 %v1522, 17
      %v1528 = vpop.permute.xlu0 %1527
      %v1529 = vsel %vm669, %v660, %v1526
      %v1530 = vsel %vm669, %v1526, %v1528
      %v1533 = vsel %vm652, %v1529, 0.0
      %v1534 = vsel %vm653, %v1530, 0.0
      %1535 = vrot.lane.b32.xlu0 %v1521, 15
      %v1536 = vpop.permute.xlu0 %1535
      %1537 = vrot.lane.b32.xlu0 %v1522, 15
      %v1538 = vpop.permute.xlu0 %1537
      %v1539 = vsel %vm696, %v687, %v1536
      %v1540 = vsel %vm696, %v1536, %v1538
      %v1543 = vsel %vm684, %v1539, 0.0
      %v1544 = vsel %vm685, %v1540, 0.0
      %1545 = vrot.lane.b32.xlu0 %v1521, 1
      %v1546 = vpop.permute.xlu0 %1545
      %1547 = vrot.lane.b32.xlu0 %v1522, 1
      %v1548 = vpop.permute.xlu0 %1547
      %v1549 = vsel %vm719, %v710, %v1546
      %v1550 = vsel %vm719, %v1546, %v1548
      %v1553 = vsel %vm652, %v1549, 0.0
      %v1554 = vsel %vm653, %v1550, 0.0
      %1555 = vrot.lane.b32.xlu0 %v1521, 127
      %v1556 = vpop.permute.xlu0 %1555
      %1557 = vrot.lane.b32.xlu0 %v1522, 127
      %v1558 = vpop.permute.xlu0 %1557
      %v1559 = vsel %vm742, %v1556, %v1558
      %v1560 = vsel %vm742, %v1558, %v737
      %v1563 = vsel %vm684, %v1559, 0.0
      %v1564 = vsel %vm685, %v1560, 0.0
      %1565 = vrot.lane.b32.xlu0 %v1521, 113
      %v1566 = vpop.permute.xlu0 %1565
      %1567 = vrot.lane.b32.xlu0 %v1522, 113
      %v1568 = vpop.permute.xlu0 %1567
      %v1569 = vsel %vm765, %v1566, %v1568
      %v1570 = vsel %vm765, %v1568, %v760
      %v1573 = vsel %vm652, %v1569, 0.0
      %v1574 = vsel %vm653, %v1570, 0.0
      %1575 = vrot.lane.b32.xlu0 %v1521, 111
      %v1576 = vpop.permute.xlu0 %1575
      %1577 = vrot.lane.b32.xlu0 %v1522, 111
      %v1578 = vpop.permute.xlu0 %1577
      %v1579 = vsel %vm788, %v1576, %v1578
      %v1580 = vsel %vm788, %v1578, %v783
      %v1583 = vsel %vm684, %v1579, 0.0
      %v1584 = vsel %vm685, %v1580, 0.0
      %1585 = vrot.lane.b32.xlu0 %v1521, 16
      %v1586 = vpop.permute.xlu0 %1585
      %1587 = vrot.lane.b32.xlu0 %v1522, 16
      %v1588 = vpop.permute.xlu0 %1587
      %v1589 = vsel %vm811, %v802, %v1586
      %v1590 = vsel %vm811, %v1586, %v1588
      %1593 = vrot.lane.b32.xlu0 %v1521, 112
      %v1594 = vpop.permute.xlu0 %1593
      %1595 = vrot.lane.b32.xlu0 %v1522, 112
      %v1596 = vpop.permute.xlu0 %1595
      %v1597 = vsel %vm830, %v1594, %v1596
      %v1598 = vsel %vm830, %v1596, %v825
      %v1601 = vld [vmem:[%s13] sm:$0xff]
      %v1603 = vsel %vm1150, %v1601, 0
      %1605 = vmatpush.msra.mxu0 0.0
      %1606 = vmatpush.msra.mxu0 0.0
      %1607 = vmatpush.msra.mxu0 0.0
      %1608 = vmatpush.msra.mxu0 0.0
      %1609 = vmatpush.msra.mxu0 0.0
      %1610 = vmatpush.msra.mxu0 0.0
      %1611 = vmatpush.msra.mxu0 0.0
      %1612 = vmatpush.msra.mxu0 %v1583
      %1613 = vmatpush.msra.mxu0 %v1597
      %1614 = vmatpush.msra.mxu0 %v1573
      %1615 = vmatpush.msra.mxu0 %v1563
      %1616 = vmatpush.msra.mxu0 %v1521
      %1617 = vmatpush.msra.mxu0 %v1553
      %1618 = vmatpush.msra.mxu0 %v1543
      %1619 = vmatpush.msra.mxu0 %v1589
      %1620 = vmatpush.msra.mxu0 %v1533
      %1621 = vmatmul.f32.gmra.mxu0 %v1603
      %v1622 = vpop.f32.mrf.mxu0
      %v1623 = vadd.f32 0.0, %v1622
      %1624 = vdwg.mxu0
      %1625 = vmatpush.msra.mxu0 0.0
      %1626 = vmatpush.msra.mxu0 0.0
      %1627 = vmatpush.msra.mxu0 0.0
      %1628 = vmatpush.msra.mxu0 0.0
      %1629 = vmatpush.msra.mxu0 0.0
      %1630 = vmatpush.msra.mxu0 0.0
      %1631 = vmatpush.msra.mxu0 0.0
      %1632 = vmatpush.msra.mxu0 %v1584
      %1633 = vmatpush.msra.mxu0 %v1598
      %1634 = vmatpush.msra.mxu0 %v1574
      %1635 = vmatpush.msra.mxu0 %v1564
      %1636 = vmatpush.msra.mxu0 %v1522
      %1637 = vmatpush.msra.mxu0 %v1554
      %1638 = vmatpush.msra.mxu0 %v1544
      %1639 = vmatpush.msra.mxu0 %v1590
      %1640 = vmatpush.msra.mxu0 %v1534
      %1641 = vmatmul.f32.gmra.mxu0 %v1603
      %v1642 = vpop.f32.mrf.mxu0
      %v1643 = vadd.f32 0.0, %v1642
      %1644 = vdwg.mxu0
      %v1645 = vadd.f32 %v1623, %v1643
      %1646 = vadd.xlane.f32.xlu0 %v1645
      %v1647 = vpop.xlane.xlu0 %1646
      %v1648 = vrot.slane %v1647, 4
      %v1649 = vadd.f32 %v1647, %v1648
      %v1650 = vrot.slane %v1649, 2
      %v1651 = vadd.f32 %v1649, %v1650
      %v1652 = vrot.slane %v1651, 1
      %v1653 = vadd.f32 %v1651, %v1652
      %s1654 = vtos %v1653
      %v1655 = vstv %s1654
      %v1656 = vmul.f32 %v1623, %v1623
      %v1657 = vmul.f32 %v1643, %v1643
      %v1658 = vadd.f32 %v1656, %v1657
      %1659 = vadd.xlane.f32.xlu0 %v1658
      %v1660 = vpop.xlane.xlu0 %1659
      %v1661 = vrot.slane %v1660, 4
      %v1662 = vadd.f32 %v1660, %v1661
      %v1663 = vrot.slane %v1662, 2
      %v1664 = vadd.f32 %v1662, %v1663
      %v1665 = vrot.slane %v1664, 1
      %v1666 = vadd.f32 %v1664, %v1665
      %s1667 = vtos %v1666
      %v1668 = vstv %s1667
      %v1669 = vmul.f32 %v1655, %v954
      %v1670 = vmul.f32 %v1668, %v954
      %v1671 = vmul.f32 %v1669, %v1669
      %v1672 = vsub.f32 %v1670, %v1671
      %v1673 = vmax.f32 %v1672, 0.0
      %v1674 = vsub.f32 %v1623, %v1669
      %v1675 = vsub.f32 %v1643, %v1669
      %v1676 = vadd.f32 %v1673, 1e-05
      %v1677 = vrsqrt.pop %v1676
      %v1678 = vmul.f32 %v1677, %v1676
      %v1679 = vmul.f32 %v1678, %v1677
      %v1680 = vmul.f32 0.5, %v1679
      %v1681 = vsub.f32 1.5, %v1680
      %v1682 = vmul.f32 %v1677, %v1681
      %vm1683 = vweird.f32 %v1676
      %vm1684 = vweird.f32 %v1677
      %vm1685 = vmor %vm1683, %vm1684
      %v1686 = vsel %vm1685, %v1677, %v1682
      %v1687 = vmul.f32 %v1674, %v1686
      %v1688 = vmul.f32 %v1675, %v1686
      %v1689 = vld [vmem:[%s14] sm:$0xff]
      %1691 = vset.pattern.permute.xlu0 0
      %1692 = vperm.xlu0 %1691, %v1689
      %v1693 = vpop.permute.xlu0 %1692
      %v1695 = vmul.f32 %v1687, %v1693
      %v1696 = vmul.f32 %v1688, %v1693
      %v1697 = vld [vmem:[%s15] sm:$0xff]
      %1699 = vset.pattern.permute.xlu0 0
      %1700 = vperm.xlu0 %1699, %v1697
      %v1701 = vpop.permute.xlu0 %1700
      %v1703 = vadd.f32 %v1695, %v1701
      %v1704 = vadd.f32 %v1696, %v1701
      %v1705 = vld [vmem:[%s550] sm:$0xff]
      %1707 = vset.pattern.permute.xlu0 0
      %1708 = vperm.xlu0 %1707, %v1705
      %v1709 = vpop.permute.xlu0 %1708
      %v1711 = vadd.f32 %v1703, %v1709
      %v1712 = vadd.f32 %v1704, %v1709
      %1713 = vst [vmem:[%s555] sm:$0xff] %v1711
      %1714 = vst [vmem:[%s555 + $0x8] sm:$0xff] %v1712
      %p1715 = scmp.lt.s32.totalorder %s27, 1
      %s1716 = scalar_select %p1715, %s27, 1
      %s1717 = smul.addr %s1716, 2
      %s1718 = smul.addr %s1717, 8
      %s1719 = scalar_lea.vmem %s16, %s1718
      // Predicated region
      $region85: #{up_forward.1} parent=83 // pred_check
        %p1720 = pneg %p396
      $region86: #{up_forward.1} parent=83 // pred_check_branch
        %1722 = sbr.rel (%p1720) target = $region88
      $region87: #{up_forward.1} parent=83 // pred_region
        _
      $region88: #{up_forward.1} parent=83 // pred_fallthru
        _
    $region84: #{up_forward.1} parent=5 // pred_fallthru
      _
    %p1723 = scmp.le.s32.totalorder 2, %s22
    // Predicated region
    $region89: #{up_forward.1} parent=5 // pred_check
      %p1724 = pneg %p1723
    $region90: #{up_forward.1} parent=5 // pred_check_branch
      %1726 = sbr.rel (%p1724) target = $region92
    $region91: #{up_forward.1} parent=5 // pred_region
      %s1727 = ssub.s32 %s22, 2
      // Predicated region
      $region93: #{up_forward.1} parent=91 // pred_check
        %p1728 = pneg %p402
      $region94: #{up_forward.1} parent=91 // pred_check_branch
        %1730 = sbr.rel (%p1728) target = $region96
      $region95: #{up_forward.1} parent=91 // pred_region
        %p1731 = scmp.lt.s32.totalorder %s28, 1
        %s1732 = scalar_select %p1731, %s28, 1
        %s1733 = smul.addr %s1732, 2
        %s1734 = smul.addr %s1733, 8
        %s1735 = scalar_lea.vmem %s16, %s1734
      $region96: #{up_forward.1} parent=91 // pred_fallthru
        _
    $region92: #{up_forward.1} parent=5 // pred_fallthru
      _
  $region6: #{up_forward.1} parent=0 // loop_footer
    %s26 = sadd.s32 1, %s22
  $region7: #{up_forward.1} parent=0 // loop_footer_branch
    %21 = sbr.rel target = $region3
  $region8: #{up_forward.1} parent=0 // loop_exit
    _

</llo_original>
